<compile_context>
chip_gen: v5e
topology: v5e:2x2
jax: 0.10.0
libtpu: 0.0.40
codegen_flags: <defaults>
</compile_context>

<pallas_src>
import math
import functools

import jax
import jax.numpy as jnp
from jax.experimental import pallas as pl
from jax.experimental.pallas import tpu as pltpu


# ----------------------------- in-kernel helpers -----------------------------

def _layernorm(x, alpha, bias, eps=1e-6):
    # matches Norm: alpha * (x - mean) / (std + eps) + bias, torch.std unbiased (N-1)
    d = x.shape[-1]
    mu = jnp.mean(x, axis=-1, keepdims=True)
    diff = x - mu
    var = jnp.sum(diff * diff, axis=-1, keepdims=True) * jnp.float32(1.0 / (d - 1))
    inv = pl.reciprocal(jnp.sqrt(var) + jnp.float32(eps), approx=True)
    return alpha * diff * inv + bias


# --------------------------------- kernel ------------------------------------

def fused_encoder_kernel(emb_ref, pos_ref, maskb_ref,
                         wqkv_ref, bqkv_ref, wo_ref, bo_ref,
                         a1_ref, c1_ref, a2_ref, c2_ref,
                         w1_ref, d1_ref, w2_ref, d2_ref,
                         na_ref, nb_ref,
                         o_ref,
                         x_ref,                       # VMEM scratch: resident activation
                         *, heads, d_model):
    l = pl.program_id(1)
    n_layers = pl.num_programs(1)

    # layer 0 for this batch element: x = embed(src)*sqrt(d_model) + posEmbed  (dropout=id)
    @pl.when(l == 0)
    def _():
        x_ref[...] = emb_ref[0] * jnp.float32(math.sqrt(d_model)) + pos_ref[0]

    x = x_ref[...]                       # (S, D) float32, resident across layers
    mask_bias = maskb_ref[0]             # (1, S) additive bias: 0 or -1e9
    S, D = x.shape
    d_k = D // heads
    scale = jnp.float32(1.0 / math.sqrt(d_k))

    # ---- self-attention sublayer: x = x + Attn(Norm1(x)) ----
    x2 = _layernorm(x, a1_ref[0], c1_ref[0])
    qkv = jnp.dot(x2.astype(jnp.bfloat16), wqkv_ref[0],
                  preferred_element_type=jnp.float32) + bqkv_ref[0]        # (S, 3D)

    qh = qkv[:, 0 * D:1 * D].reshape(S, heads, d_k).transpose(1, 0, 2)     # (H, S, dk)
    kh = qkv[:, 1 * D:2 * D].reshape(S, heads, d_k).transpose(1, 0, 2)
    vh = qkv[:, 2 * D:3 * D].reshape(S, heads, d_k).transpose(1, 0, 2)

    s = jnp.einsum('hqd,hkd->hqk',
                   qh.astype(jnp.bfloat16), kh.astype(jnp.bfloat16),
                   preferred_element_type=jnp.float32) * scale             # (H, S, S)
    s = s + mask_bias                                  # broadcast over heads / queries
    s = s - jnp.max(s, axis=-1, keepdims=True)
    p = jnp.exp(s)
    p = p * pl.reciprocal(jnp.sum(p, axis=-1, keepdims=True), approx=True)

    ctx = jnp.einsum('hqk,hkd->hqd',
                     p.astype(jnp.bfloat16), vh.astype(jnp.bfloat16),
                     preferred_element_type=jnp.float32)                   # (H, S, dk)
    ctx = ctx.transpose(1, 0, 2).reshape(S, D)

    attn = jnp.dot(ctx.astype(jnp.bfloat16), wo_ref[0],
                   preferred_element_type=jnp.float32) + bo_ref[0]
    x = x + attn                         # dropout = identity

    # ---- feed-forward sublayer: x = x + FFN(Norm2(x)) ----
    x2 = _layernorm(x, a2_ref[0], c2_ref[0])
    h1 = jnp.maximum(
        jnp.dot(x2.astype(jnp.bfloat16), w1_ref[0],
                preferred_element_type=jnp.float32) + d1_ref[0], 0.0)
    ff = jnp.dot(h1.astype(jnp.bfloat16), w2_ref[0],
                 preferred_element_type=jnp.float32) + d2_ref[0]
    x = x + ff                           # dropout = identity

    x_ref[...] = x

    # last layer: final Norm, write the output block (only HBM store of the activation)
    @pl.when(l == n_layers - 1)
    def _():
        o_ref[0] = _layernorm(x, na_ref[...], nb_ref[...])


# ------------------------------ pallas wrapper --------------------------------

def encoder_forward(src, mask, params, *, heads):
    # embedding lookup (data-dependent gather) stays in plain JAX glue
    emb = jnp.take(params["embed"], src, axis=0)                     # (B, S, D) f32
    B, S = src.shape
    D = params["embed"].shape[1]
    pos = params["pos_table"][:, :S, :]                              # (1, S, D)
    # additive attention bias computed once (replaces per-head masked_fill)
    mask_bias = jnp.where(mask == 0, jnp.float32(-1e9), jnp.float32(0.0))  # (B, 1, S)
    n_layers = params["wqkv"].shape[0]

    layer_names = ("wqkv", "bqkv", "wo", "bo", "a1", "c1", "a2", "c2",
                   "w1", "d1", "w2", "d2")
    layer_ws = [params[k] for k in layer_names]

    def layer_spec(arr):
        nd = arr.ndim
        return pl.BlockSpec((1,) + arr.shape[1:],
                            lambda b, l, _nd=nd: (l,) + (0,) * (_nd - 1))

    in_specs = [
        pl.BlockSpec((1, S, D), lambda b, l: (b, 0, 0)),   # emb
        pl.BlockSpec((1, S, D), lambda b, l: (0, 0, 0)),   # pos table slice
        pl.BlockSpec((1, 1, S), lambda b, l: (b, 0, 0)),   # mask bias
    ]
    in_specs += [layer_spec(a) for a in layer_ws]
    in_specs += [pl.BlockSpec((1, D), lambda b, l: (0, 0)),   # final norm alpha
                 pl.BlockSpec((1, D), lambda b, l: (0, 0))]   # final norm bias

    return pl.pallas_call(
        functools.partial(fused_encoder_kernel, heads=heads, d_model=D),
        out_shape=jax.ShapeDtypeStruct((B, S, D), jnp.float32),
        grid=(B, n_layers),                                  # batch x layers
        in_specs=in_specs,
        out_specs=pl.BlockSpec((1, S, D), lambda b, l: (b, 0, 0)),
        scratch_shapes=[pltpu.VMEM((S, D), jnp.float32)],    # resident activation
        compiler_params=pltpu.CompilerParams(
            dimension_semantics=("parallel", "arbitrary"),
            vmem_limit_bytes=32 * 1024 * 1024),
    )(emb, pos, mask_bias, *layer_ws,
      params["norm_alpha"], params["norm_bias"])


# -------------------------------- parameters ----------------------------------

def build_pos_table(max_len, d_model):
    # reproduce the PyTorch double loop exactly (including its unusual exponents)
    rows = []
    for pos in range(max_len):
        row = [0.0] * d_model
        for i in range(0, d_model, 2):
            row[i] = math.sin(pos / 10000 ** (2 * i / d_model))
            row[i + 1] = math.cos(pos / 10000 ** (2 * (i + 1) / d_model))
        rows.append(row)
    return jnp.asarray(rows, dtype=jnp.float32)[None]                # (1, max_len, D)


def init_params(key, vocab_size, d_model, d_ff, N, max_len):
    keys = iter(jax.random.split(key, 16))

    def nrm(shape, scale=0.02, dtype=jnp.float32):
        return (scale * jax.random.normal(next(keys), shape)).astype(dtype)

    bf16 = jnp.bfloat16
    params = {
        "embed": nrm((vocab_size, d_model), 1.0),
        "pos_table": build_pos_table(max_len, d_model),
        "norm_alpha": jnp.ones((1, d_model), jnp.float32),
        "norm_bias": jnp.zeros((1, d_model), jnp.float32),
        # per-layer weights stacked on a leading (N, ...) axis; matmul weights in bf16
        "wqkv": nrm((N, d_model, 3 * d_model), dtype=bf16),   # fused Q/K/V projection
        "bqkv": nrm((N, 1, 3 * d_model)),
        "wo": nrm((N, d_model, d_model), dtype=bf16),
        "bo": nrm((N, 1, d_model)),
        "a1": jnp.ones((N, 1, d_model), jnp.float32),
        "c1": jnp.zeros((N, 1, d_model), jnp.float32),
        "a2": jnp.ones((N, 1, d_model), jnp.float32),
        "c2": jnp.zeros((N, 1, d_model), jnp.float32),
        "w1": nrm((N, d_model, d_ff), dtype=bf16),
        "d1": nrm((N, 1, d_ff)),
        "w2": nrm((N, d_ff, d_model), dtype=bf16),
        "d2": nrm((N, 1, d_model)),
    }
    return params


# ----------------------------------- main --------------------------------------

if __name__ == "__main__":
    vocab_size, d_model, heads, N, max_len = 50, 32, 4, 2, 200
    d_ff = 64                      # FeedForward hidden size (scaled-down default)
    B, S = 2, 8

    key = jax.random.PRNGKey(0)
    k_tok, k_par = jax.random.split(key)

    src = jax.random.randint(k_tok, (B, S), 0, vocab_size).astype(jnp.int32)  # (B, S)
    mask = (src != 0).astype(jnp.int32)[:, None, :]                           # (B, 1, S)

    params = init_params(k_par, vocab_size, d_model, d_ff, N, max_len)

    fwd = jax.jit(functools.partial(encoder_forward, heads=heads))
    out = fwd(src, mask, params)
    out = jax.block_until_ready(out)

    assert out.shape == (B, S, d_model), out.shape
    assert out.dtype == jnp.float32
    assert bool(jnp.all(jnp.isfinite(out)))
    print("KERNEL_OK")
</pallas_src>

<mosaic_0001>
module attributes {stable_mosaic.version = 11 : i64} {
  func.func @fused_encoder_kernel(%arg0: i32, %arg1: i32, %arg2: memref<1x8x32xf32, #tpu.memory_space<vmem>>, %arg3: memref<1x8x32xf32, #tpu.memory_space<vmem>>, %arg4: memref<1x1x8xf32, #tpu.memory_space<vmem>>, %arg5: memref<1x32x96xbf16, #tpu.memory_space<vmem>>, %arg6: memref<1x1x96xf32, #tpu.memory_space<vmem>>, %arg7: memref<1x32x32xbf16, #tpu.memory_space<vmem>>, %arg8: memref<1x1x32xf32, #tpu.memory_space<vmem>>, %arg9: memref<1x1x32xf32, #tpu.memory_space<vmem>>, %arg10: memref<1x1x32xf32, #tpu.memory_space<vmem>>, %arg11: memref<1x1x32xf32, #tpu.memory_space<vmem>>, %arg12: memref<1x1x32xf32, #tpu.memory_space<vmem>>, %arg13: memref<1x32x64xbf16, #tpu.memory_space<vmem>>, %arg14: memref<1x1x64xf32, #tpu.memory_space<vmem>>, %arg15: memref<1x64x32xbf16, #tpu.memory_space<vmem>>, %arg16: memref<1x1x32xf32, #tpu.memory_space<vmem>>, %arg17: memref<1x32xf32, #tpu.memory_space<vmem>>, %arg18: memref<1x32xf32, #tpu.memory_space<vmem>>, %arg19: memref<1x8x32xf32, #tpu.memory_space<vmem>>, %arg20: memref<8x32xf32, #tpu.memory_space<vmem>>) attributes {dimension_semantics = [#tpu.dimension_semantics<parallel>, #tpu.dimension_semantics<arbitrary>], iteration_bounds = array<i64: 2, 2>, scalar_prefetch = 0 : i64, scratch_operands = 1 : i64, tpu.core_type = #tpu.core_type<tc>, window_params = [{transform_indices = @transform_0, window_bounds = array<i64: 1, 8, 32>}, {pipeline_mode = #tpu.pipeline_mode<synchronous>, transform_indices = @transform_1, window_bounds = array<i64: 1, 8, 32>}, {transform_indices = @transform_2, window_bounds = array<i64: 1, 1, 8>}, {transform_indices = @transform_3, window_bounds = array<i64: 1, 32, 96>}, {transform_indices = @transform_4, window_bounds = array<i64: 1, 1, 96>}, {transform_indices = @transform_5, window_bounds = array<i64: 1, 32, 32>}, {transform_indices = @transform_6, window_bounds = array<i64: 1, 1, 32>}, {transform_indices = @transform_7, window_bounds = array<i64: 1, 1, 32>}, {transform_indices = @transform_8, window_bounds = array<i64: 1, 1, 32>}, {transform_indices = @transform_9, window_bounds = array<i64: 1, 1, 32>}, {transform_indices = @transform_10, window_bounds = array<i64: 1, 1, 32>}, {transform_indices = @transform_11, window_bounds = array<i64: 1, 32, 64>}, {transform_indices = @transform_12, window_bounds = array<i64: 1, 1, 64>}, {transform_indices = @transform_13, window_bounds = array<i64: 1, 64, 32>}, {transform_indices = @transform_14, window_bounds = array<i64: 1, 1, 32>}, {pipeline_mode = #tpu.pipeline_mode<synchronous>, transform_indices = @transform_15, window_bounds = array<i64: 1, 32>}, {pipeline_mode = #tpu.pipeline_mode<synchronous>, transform_indices = @transform_16, window_bounds = array<i64: 1, 32>}, {transform_indices = @transform_17, window_bounds = array<i64: 1, 8, 32>}]} {
    %c0_i32 = arith.constant 0 : i32
    %0 = arith.cmpi eq, %arg1, %c0_i32 : i32
    %1 = arith.extui %0 : i1 to i32
    %c0_i32_0 = arith.constant 0 : i32
    %2 = arith.cmpi ne, %1, %c0_i32_0 : i32
    scf.if %2 {
      %c0_63 = arith.constant 0 : index
      %c0_64 = arith.constant 0 : index
      %c0_65 = arith.constant 0 : index
      %128 = vector.load %arg2[%c0_63, %c0_64, %c0_65] : memref<1x8x32xf32, #tpu.memory_space<vmem>>, vector<1x8x32xf32>
      %129 = vector.shape_cast %128 : vector<1x8x32xf32> to vector<8x32xf32>
      %cst_66 = arith.constant 5.65685415 : f32
      %130 = vector.broadcast %cst_66 : f32 to vector<8x32xf32>
      %131 = arith.mulf %129, %130 : vector<8x32xf32>
      %c0_67 = arith.constant 0 : index
      %c0_68 = arith.constant 0 : index
      %c0_69 = arith.constant 0 : index
      %132 = vector.load %arg3[%c0_67, %c0_68, %c0_69] : memref<1x8x32xf32, #tpu.memory_space<vmem>>, vector<1x8x32xf32>
      %133 = vector.shape_cast %132 : vector<1x8x32xf32> to vector<8x32xf32>
      %134 = arith.addf %131, %133 : vector<8x32xf32>
      %c0_70 = arith.constant 0 : index
      %c0_71 = arith.constant 0 : index
      %135 = vector.load %arg20[%c0_70, %c0_71] : memref<8x32xf32, #tpu.memory_space<vmem>>, vector<8x32xf32>
      tpu.vector_store %arg20[%c0_70, %c0_71], %134 {strides = array<i32>} : memref<8x32xf32, #tpu.memory_space<vmem>>, vector<8x32xf32>,
    } else {
    }
    %c0 = arith.constant 0 : index
    %c0_1 = arith.constant 0 : index
    %3 = vector.load %arg20[%c0, %c0_1] : memref<8x32xf32, #tpu.memory_space<vmem>>, vector<8x32xf32>
    %c0_2 = arith.constant 0 : index
    %c0_3 = arith.constant 0 : index
    %c0_4 = arith.constant 0 : index
    %4 = vector.load %arg4[%c0_2, %c0_3, %c0_4] : memref<1x1x8xf32, #tpu.memory_space<vmem>>, vector<1x1x8xf32>
    %5 = vector.shape_cast %4 : vector<1x1x8xf32> to vector<1x8xf32>
    %c0_5 = arith.constant 0 : index
    %c0_6 = arith.constant 0 : index
    %c0_7 = arith.constant 0 : index
    %6 = vector.load %arg9[%c0_5, %c0_6, %c0_7] : memref<1x1x32xf32, #tpu.memory_space<vmem>>, vector<1x1x32xf32>
    %7 = vector.shape_cast %6 : vector<1x1x32xf32> to vector<1x32xf32>
    %c0_8 = arith.constant 0 : index
    %c0_9 = arith.constant 0 : index
    %c0_10 = arith.constant 0 : index
    %8 = vector.load %arg10[%c0_8, %c0_9, %c0_10] : memref<1x1x32xf32, #tpu.memory_space<vmem>>, vector<1x1x32xf32>
    %9 = vector.shape_cast %8 : vector<1x1x32xf32> to vector<1x32xf32>
    %cst = arith.constant dense<0.000000e+00> : vector<8xf32>
    %10 = vector.multi_reduction <add>, %3, %cst [1] : vector<8x32xf32> to vector<8xf32>
    %11 = vector.shape_cast %10 : vector<8xf32> to vector<8x1xf32>
    %cst_11 = arith.constant 3.200000e+01 : f32
    %12 = vector.broadcast %cst_11 : f32 to vector<8x1xf32>
    %13 = arith.divf %11, %12 : vector<8x1xf32>
    %14 = vector.broadcast %13 : vector<8x1xf32> to vector<8x32xf32>
    %15 = arith.subf %3, %14 : vector<8x32xf32>
    %16 = arith.mulf %15, %15 : vector<8x32xf32>
    %cst_12 = arith.constant dense<0.000000e+00> : vector<8xf32>
    %17 = vector.multi_reduction <add>, %16, %cst_12 [1] : vector<8x32xf32> to vector<8xf32>
    %18 = vector.shape_cast %17 : vector<8xf32> to vector<8x1xf32>
    %cst_13 = arith.constant 0.0322580636 : f32
    %19 = vector.broadcast %cst_13 : f32 to vector<8x1xf32>
    %20 = arith.mulf %18, %19 : vector<8x1xf32>
    %21 = math.sqrt %20 : vector<8x1xf32>
    %cst_14 = arith.constant 9.99999997E-7 : f32
    %22 = vector.broadcast %cst_14 : f32 to vector<8x1xf32>
    %23 = arith.addf %21, %22 : vector<8x1xf32>
    %24 = tpu.reciprocal %23 {approx = true} : vector<8x1xf32> -> vector<8x1xf32>
    %25 = vector.broadcast %7 : vector<1x32xf32> to vector<8x32xf32>
    %26 = arith.mulf %25, %15 : vector<8x32xf32>
    %27 = vector.broadcast %24 : vector<8x1xf32> to vector<8x32xf32>
    %28 = arith.mulf %26, %27 : vector<8x32xf32>
    %29 = vector.broadcast %9 : vector<1x32xf32> to vector<8x32xf32>
    %30 = arith.addf %28, %29 : vector<8x32xf32>
    %31 = arith.truncf %30 : vector<8x32xf32> to vector<8x32xbf16>
    %c0_15 = arith.constant 0 : index
    %c0_16 = arith.constant 0 : index
    %c0_17 = arith.constant 0 : index
    %32 = vector.load %arg5[%c0_15, %c0_16, %c0_17] : memref<1x32x96xbf16, #tpu.memory_space<vmem>>, vector<1x32x96xbf16>
    %33 = vector.shape_cast %32 : vector<1x32x96xbf16> to vector<32x96xbf16>
    %cst_18 = arith.constant dense<0.000000e+00> : vector<8x96xf32>
    %34 = tpu.matmul %31, %33, %cst_18 {dimension_numbers = #tpu.dot_dimension_numbers<[1], [0], [0], [1], [0, 0, 1, 1], [], []>} : vector<8x32xbf16>, vector<32x96xbf16>, vector<8x96xf32> -> vector<8x96xf32>
    %c0_19 = arith.constant 0 : index
    %c0_20 = arith.constant 0 : index
    %c0_21 = arith.constant 0 : index
    %35 = vector.load %arg6[%c0_19, %c0_20, %c0_21] : memref<1x1x96xf32, #tpu.memory_space<vmem>>, vector<1x1x96xf32>
    %36 = vector.shape_cast %35 : vector<1x1x96xf32> to vector<1x96xf32>
    %37 = vector.broadcast %36 : vector<1x96xf32> to vector<8x96xf32>
    %38 = arith.addf %34, %37 : vector<8x96xf32>
    %39 = vector.extract_strided_slice %38 {offsets = [0, 0], sizes = [8, 32], strides = [1, 1]} : vector<8x96xf32> to vector<8x32xf32>
    %40 = vector.shape_cast %39 : vector<8x32xf32> to vector<8x4x8xf32>
    %41 = tpu.transpose %40, [1, 0, 2] : vector<8x4x8xf32> -> vector<4x8x8xf32>
    %42 = vector.extract_strided_slice %38 {offsets = [0, 32], sizes = [8, 32], strides = [1, 1]} : vector<8x96xf32> to vector<8x32xf32>
    %43 = vector.shape_cast %42 : vector<8x32xf32> to vector<8x4x8xf32>
    %44 = tpu.transpose %43, [1, 0, 2] : vector<8x4x8xf32> -> vector<4x8x8xf32>
    %45 = vector.extract_strided_slice %38 {offsets = [0, 64], sizes = [8, 32], strides = [1, 1]} : vector<8x96xf32> to vector<8x32xf32>
    %46 = vector.shape_cast %45 : vector<8x32xf32> to vector<8x4x8xf32>
    %47 = tpu.transpose %46, [1, 0, 2] : vector<8x4x8xf32> -> vector<4x8x8xf32>
    %48 = arith.truncf %41 : vector<4x8x8xf32> to vector<4x8x8xbf16>
    %49 = arith.truncf %44 : vector<4x8x8xf32> to vector<4x8x8xbf16>
    "tpu.trace_start"() <{level = 10 : i32, message = "hqd,hkd->hqk"}> : () -> ()
    %cst_22 = arith.constant dense<0.000000e+00> : vector<4x8x8xf32>
    %50 = tpu.matmul %48, %49, %cst_22 {dimension_numbers = #tpu.dot_dimension_numbers<[2], [2], [1], [1], [0, 0, 0, 1, 1, 1], [0], [0]>} : vector<4x8x8xbf16>, vector<4x8x8xbf16>, vector<4x8x8xf32> -> vector<4x8x8xf32>
    "tpu.trace_stop"() : () -> ()
    %cst_23 = arith.constant 0.353553385 : f32
    %51 = vector.broadcast %cst_23 : f32 to vector<4x8x8xf32>
    %52 = arith.mulf %50, %51 : vector<4x8x8xf32>
    %53 = vector.shape_cast %5 : vector<1x8xf32> to vector<1x1x8xf32>
    %54 = vector.broadcast %53 : vector<1x1x8xf32> to vector<4x8x8xf32>
    %55 = arith.addf %52, %54 : vector<4x8x8xf32>
    %cst_24 = arith.constant dense<0xFF800000> : vector<4x8xf32>
    %56 = vector.multi_reduction <maximumf>, %55, %cst_24 [2] : vector<4x8x8xf32> to vector<4x8xf32>
    %57 = vector.shape_cast %56 : vector<4x8xf32> to vector<4x8x1xf32>
    %58 = vector.broadcast %57 : vector<4x8x1xf32> to vector<4x8x8xf32>
    %59 = arith.subf %55, %58 : vector<4x8x8xf32>
    %60 = math.exp %59 : vector<4x8x8xf32>
    %cst_25 = arith.constant dense<0.000000e+00> : vector<4x8xf32>
    %61 = vector.multi_reduction <add>, %60, %cst_25 [2] : vector<4x8x8xf32> to vector<4x8xf32>
    %62 = vector.shape_cast %61 : vector<4x8xf32> to vector<4x8x1xf32>
    %63 = tpu.reciprocal %62 {approx = true} : vector<4x8x1xf32> -> vector<4x8x1xf32>
    %64 = vector.broadcast %63 : vector<4x8x1xf32> to vector<4x8x8xf32>
    %65 = arith.mulf %60, %64 : vector<4x8x8xf32>
    %66 = arith.truncf %65 : vector<4x8x8xf32> to vector<4x8x8xbf16>
    %67 = arith.truncf %47 : vector<4x8x8xf32> to vector<4x8x8xbf16>
    "tpu.trace_start"() <{level = 10 : i32, message = "hqk,hkd->hqd"}> : () -> ()
    %cst_26 = arith.constant dense<0.000000e+00> : vector<4x8x8xf32>
    %68 = tpu.matmul %66, %67, %cst_26 {dimension_numbers = #tpu.dot_dimension_numbers<[2], [1], [1], [2], [0, 0, 0, 1, 1, 2], [0], [0]>} : vector<4x8x8xbf16>, vector<4x8x8xbf16>, vector<4x8x8xf32> -> vector<4x8x8xf32>
    "tpu.trace_stop"() : () -> ()
    %69 = tpu.transpose %68, [1, 0, 2] : vector<4x8x8xf32> -> vector<8x4x8xf32>
    %70 = vector.shape_cast %69 : vector<8x4x8xf32> to vector<8x32xf32>
    %71 = arith.truncf %70 : vector<8x32xf32> to vector<8x32xbf16>
    %c0_27 = arith.constant 0 : index
    %c0_28 = arith.constant 0 : index
    %c0_29 = arith.constant 0 : index
    %72 = vector.load %arg7[%c0_27, %c0_28, %c0_29] : memref<1x32x32xbf16, #tpu.memory_space<vmem>>, vector<1x32x32xbf16>
    %73 = vector.shape_cast %72 : vector<1x32x32xbf16> to vector<32x32xbf16>
    %cst_30 = arith.constant dense<0.000000e+00> : vector<8x32xf32>
    %74 = tpu.matmul %71, %73, %cst_30 {dimension_numbers = #tpu.dot_dimension_numbers<[1], [0], [0], [1], [0, 0, 1, 1], [], []>} : vector<8x32xbf16>, vector<32x32xbf16>, vector<8x32xf32> -> vector<8x32xf32>
    %c0_31 = arith.constant 0 : index
    %c0_32 = arith.constant 0 : index
    %c0_33 = arith.constant 0 : index
    %75 = vector.load %arg8[%c0_31, %c0_32, %c0_33] : memref<1x1x32xf32, #tpu.memory_space<vmem>>, vector<1x1x32xf32>
    %76 = vector.shape_cast %75 : vector<1x1x32xf32> to vector<1x32xf32>
    %77 = vector.broadcast %76 : vector<1x32xf32> to vector<8x32xf32>
    %78 = arith.addf %74, %77 : vector<8x32xf32>
    %79 = arith.addf %3, %78 : vector<8x32xf32>
    %c0_34 = arith.constant 0 : index
    %c0_35 = arith.constant 0 : index
    %c0_36 = arith.constant 0 : index
    %80 = vector.load %arg11[%c0_34, %c0_35, %c0_36] : memref<1x1x32xf32, #tpu.memory_space<vmem>>, vector<1x1x32xf32>
    %81 = vector.shape_cast %80 : vector<1x1x32xf32> to vector<1x32xf32>
    %c0_37 = arith.constant 0 : index
    %c0_38 = arith.constant 0 : index
    %c0_39 = arith.constant 0 : index
    %82 = vector.load %arg12[%c0_37, %c0_38, %c0_39] : memref<1x1x32xf32, #tpu.memory_space<vmem>>, vector<1x1x32xf32>
    %83 = vector.shape_cast %82 : vector<1x1x32xf32> to vector<1x32xf32>
    %cst_40 = arith.constant dense<0.000000e+00> : vector<8xf32>
    %84 = vector.multi_reduction <add>, %79, %cst_40 [1] : vector<8x32xf32> to vector<8xf32>
    %85 = vector.shape_cast %84 : vector<8xf32> to vector<8x1xf32>
    %cst_41 = arith.constant 3.200000e+01 : f32
    %86 = vector.broadcast %cst_41 : f32 to vector<8x1xf32>
    %87 = arith.divf %85, %86 : vector<8x1xf32>
    %88 = vector.broadcast %87 : vector<8x1xf32> to vector<8x32xf32>
    %89 = arith.subf %79, %88 : vector<8x32xf32>
    %90 = arith.mulf %89, %89 : vector<8x32xf32>
    %cst_42 = arith.constant dense<0.000000e+00> : vector<8xf32>
    %91 = vector.multi_reduction <add>, %90, %cst_42 [1] : vector<8x32xf32> to vector<8xf32>
    %92 = vector.shape_cast %91 : vector<8xf32> to vector<8x1xf32>
    %cst_43 = arith.constant 0.0322580636 : f32
    %93 = vector.broadcast %cst_43 : f32 to vector<8x1xf32>
    %94 = arith.mulf %92, %93 : vector<8x1xf32>
    %95 = math.sqrt %94 : vector<8x1xf32>
    %cst_44 = arith.constant 9.99999997E-7 : f32
    %96 = vector.broadcast %cst_44 : f32 to vector<8x1xf32>
    %97 = arith.addf %95, %96 : vector<8x1xf32>
    %98 = tpu.reciprocal %97 {approx = true} : vector<8x1xf32> -> vector<8x1xf32>
    %99 = vector.broadcast %81 : vector<1x32xf32> to vector<8x32xf32>
    %100 = arith.mulf %99, %89 : vector<8x32xf32>
    %101 = vector.broadcast %98 : vector<8x1xf32> to vector<8x32xf32>
    %102 = arith.mulf %100, %101 : vector<8x32xf32>
    %103 = vector.broadcast %83 : vector<1x32xf32> to vector<8x32xf32>
    %104 = arith.addf %102, %103 : vector<8x32xf32>
    %105 = arith.truncf %104 : vector<8x32xf32> to vector<8x32xbf16>
    %c0_45 = arith.constant 0 : index
    %c0_46 = arith.constant 0 : index
    %c0_47 = arith.constant 0 : index
    %106 = vector.load %arg13[%c0_45, %c0_46, %c0_47] : memref<1x32x64xbf16, #tpu.memory_space<vmem>>, vector<1x32x64xbf16>
    %107 = vector.shape_cast %106 : vector<1x32x64xbf16> to vector<32x64xbf16>
    %cst_48 = arith.constant dense<0.000000e+00> : vector<8x64xf32>
    %108 = tpu.matmul %105, %107, %cst_48 {dimension_numbers = #tpu.dot_dimension_numbers<[1], [0], [0], [1], [0, 0, 1, 1], [], []>} : vector<8x32xbf16>, vector<32x64xbf16>, vector<8x64xf32> -> vector<8x64xf32>
    %c0_49 = arith.constant 0 : index
    %c0_50 = arith.constant 0 : index
    %c0_51 = arith.constant 0 : index
    %109 = vector.load %arg14[%c0_49, %c0_50, %c0_51] : memref<1x1x64xf32, #tpu.memory_space<vmem>>, vector<1x1x64xf32>
    %110 = vector.shape_cast %109 : vector<1x1x64xf32> to vector<1x64xf32>
    %111 = vector.broadcast %110 : vector<1x64xf32> to vector<8x64xf32>
    %112 = arith.addf %108, %111 : vector<8x64xf32>
    %cst_52 = arith.constant 0.000000e+00 : f32
    %113 = vector.broadcast %cst_52 : f32 to vector<8x64xf32>
    %114 = arith.maximumf %112, %113 : vector<8x64xf32>
    %115 = arith.truncf %114 : vector<8x64xf32> to vector<8x64xbf16>
    %c0_53 = arith.constant 0 : index
    %c0_54 = arith.constant 0 : index
    %c0_55 = arith.constant 0 : index
    %116 = vector.load %arg15[%c0_53, %c0_54, %c0_55] : memref<1x64x32xbf16, #tpu.memory_space<vmem>>, vector<1x64x32xbf16>
    %117 = vector.shape_cast %116 : vector<1x64x32xbf16> to vector<64x32xbf16>
    %cst_56 = arith.constant dense<0.000000e+00> : vector<8x32xf32>
    %118 = tpu.matmul %115, %117, %cst_56 {dimension_numbers = #tpu.dot_dimension_numbers<[1], [0], [0], [1], [0, 0, 1, 1], [], []>} : vector<8x64xbf16>, vector<64x32xbf16>, vector<8x32xf32> -> vector<8x32xf32>
    %c0_57 = arith.constant 0 : index
    %c0_58 = arith.constant 0 : index
    %c0_59 = arith.constant 0 : index
    %119 = vector.load %arg16[%c0_57, %c0_58, %c0_59] : memref<1x1x32xf32, #tpu.memory_space<vmem>>, vector<1x1x32xf32>
    %120 = vector.shape_cast %119 : vector<1x1x32xf32> to vector<1x32xf32>
    %121 = vector.broadcast %120 : vector<1x32xf32> to vector<8x32xf32>
    %122 = arith.addf %118, %121 : vector<8x32xf32>
    %123 = arith.addf %79, %122 : vector<8x32xf32>
    %c0_60 = arith.constant 0 : index
    %c0_61 = arith.constant 0 : index
    %124 = vector.load %arg20[%c0_60, %c0_61] : memref<8x32xf32, #tpu.memory_space<vmem>>, vector<8x32xf32>
    tpu.vector_store %arg20[%c0_60, %c0_61], %123 {strides = array<i32>} : memref<8x32xf32, #tpu.memory_space<vmem>>, vector<8x32xf32>,
    %c1_i32 = arith.constant 1 : i32
    %125 = arith.cmpi eq, %arg1, %c1_i32 : i32
    %126 = arith.extui %125 : i1 to i32
    %c0_i32_62 = arith.constant 0 : i32
    %127 = arith.cmpi ne, %126, %c0_i32_62 : i32
    scf.if %127 {
      %c0_63 = arith.constant 0 : index
      %c0_64 = arith.constant 0 : index
      %128 = vector.load %arg17[%c0_63, %c0_64] : memref<1x32xf32, #tpu.memory_space<vmem>>, vector<1x32xf32>
      %c0_65 = arith.constant 0 : index
      %c0_66 = arith.constant 0 : index
      %129 = vector.load %arg18[%c0_65, %c0_66] : memref<1x32xf32, #tpu.memory_space<vmem>>, vector<1x32xf32>
      %cst_67 = arith.constant dense<0.000000e+00> : vector<8xf32>
      %130 = vector.multi_reduction <add>, %123, %cst_67 [1] : vector<8x32xf32> to vector<8xf32>
      %131 = vector.shape_cast %130 : vector<8xf32> to vector<8x1xf32>
      %cst_68 = arith.constant 3.200000e+01 : f32
      %132 = vector.broadcast %cst_68 : f32 to vector<8x1xf32>
      %133 = arith.divf %131, %132 : vector<8x1xf32>
      %134 = vector.broadcast %133 : vector<8x1xf32> to vector<8x32xf32>
      %135 = arith.subf %123, %134 : vector<8x32xf32>
      %136 = arith.mulf %135, %135 : vector<8x32xf32>
      %cst_69 = arith.constant dense<0.000000e+00> : vector<8xf32>
      %137 = vector.multi_reduction <add>, %136, %cst_69 [1] : vector<8x32xf32> to vector<8xf32>
      %138 = vector.shape_cast %137 : vector<8xf32> to vector<8x1xf32>
      %cst_70 = arith.constant 0.0322580636 : f32
      %139 = vector.broadcast %cst_70 : f32 to vector<8x1xf32>
      %140 = arith.mulf %138, %139 : vector<8x1xf32>
      %141 = math.sqrt %140 : vector<8x1xf32>
      %cst_71 = arith.constant 9.99999997E-7 : f32
      %142 = vector.broadcast %cst_71 : f32 to vector<8x1xf32>
      %143 = arith.addf %141, %142 : vector<8x1xf32>
      %144 = tpu.reciprocal %143 {approx = true} : vector<8x1xf32> -> vector<8x1xf32>
      %145 = vector.broadcast %128 : vector<1x32xf32> to vector<8x32xf32>
      %146 = arith.mulf %145, %135 : vector<8x32xf32>
      %147 = vector.broadcast %144 : vector<8x1xf32> to vector<8x32xf32>
      %148 = arith.mulf %146, %147 : vector<8x32xf32>
      %149 = vector.broadcast %129 : vector<1x32xf32> to vector<8x32xf32>
      %150 = arith.addf %148, %149 : vector<8x32xf32>
      %c0_72 = arith.constant 0 : index
      %c0_73 = arith.constant 0 : index
      %c0_74 = arith.constant 0 : index
      %151 = vector.load %arg19[%c0_72, %c0_73, %c0_74] : memref<1x8x32xf32, #tpu.memory_space<vmem>>, vector<1x8x32xf32>
      %152 = vector.shape_cast %151 : vector<1x8x32xf32> to vector<8x32xf32>
      %153 = vector.shape_cast %150 : vector<8x32xf32> to vector<1x8x32xf32>
      tpu.vector_store %arg19[%c0_72, %c0_73, %c0_74], %153 {strides = array<i32>} : memref<1x8x32xf32, #tpu.memory_space<vmem>>, vector<1x8x32xf32>,
    } else {
    }
    return
  }
  func.func @transform_0(%arg0: i32, %arg1: i32) -> (i32, i32, i32) {
    %c0_i32 = arith.constant 0 : i32
    %c0_i32_0 = arith.constant 0 : i32
    %c0_i32_1 = arith.constant 0 : i32
    return %arg0, %c0_i32, %c0_i32_0 : i32, i32, i32
  }
  func.func @transform_1(%arg0: i32, %arg1: i32) -> (i32, i32, i32) {
    %c0_i32 = arith.constant 0 : i32
    %c0_i32_0 = arith.constant 0 : i32
    %c0_i32_1 = arith.constant 0 : i32
    %c0_i32_2 = arith.constant 0 : i32
    return %c0_i32, %c0_i32_0, %c0_i32_1 : i32, i32, i32
  }
  func.func @transform_2(%arg0: i32, %arg1: i32) -> (i32, i32, i32) {
    %c0_i32 = arith.constant 0 : i32
    %c0_i32_0 = arith.constant 0 : i32
    %c0_i32_1 = arith.constant 0 : i32
    return %arg0, %c0_i32, %c0_i32_0 : i32, i32, i32
  }
  func.func @transform_3(%arg0: i32, %arg1: i32) -> (i32, i32, i32) {
    %c0_i32 = arith.constant 0 : i32
    %c0_i32_0 = arith.constant 0 : i32
    %c0_i32_1 = arith.constant 0 : i32
    return %arg1, %c0_i32, %c0_i32_0 : i32, i32, i32
  }
  func.func @transform_4(%arg0: i32, %arg1: i32) -> (i32, i32, i32) {
    %c0_i32 = arith.constant 0 : i32
    %c0_i32_0 = arith.constant 0 : i32
    %c0_i32_1 = arith.constant 0 : i32
    return %arg1, %c0_i32, %c0_i32_0 : i32, i32, i32
  }
  func.func @transform_5(%arg0: i32, %arg1: i32) -> (i32, i32, i32) {
    %c0_i32 = arith.constant 0 : i32
    %c0_i32_0 = arith.constant 0 : i32
    %c0_i32_1 = arith.constant 0 : i32
    return %arg1, %c0_i32, %c0_i32_0 : i32, i32, i32
  }
  func.func @transform_6(%arg0: i32, %arg1: i32) -> (i32, i32, i32) {
    %c0_i32 = arith.constant 0 : i32
    %c0_i32_0 = arith.constant 0 : i32
    %c0_i32_1 = arith.constant 0 : i32
    return %arg1, %c0_i32, %c0_i32_0 : i32, i32, i32
  }
  func.func @transform_7(%arg0: i32, %arg1: i32) -> (i32, i32, i32) {
    %c0_i32 = arith.constant 0 : i32
    %c0_i32_0 = arith.constant 0 : i32
    %c0_i32_1 = arith.constant 0 : i32
    return %arg1, %c0_i32, %c0_i32_0 : i32, i32, i32
  }
  func.func @transform_8(%arg0: i32, %arg1: i32) -> (i32, i32, i32) {
    %c0_i32 = arith.constant 0 : i32
    %c0_i32_0 = arith.constant 0 : i32
    %c0_i32_1 = arith.constant 0 : i32
    return %arg1, %c0_i32, %c0_i32_0 : i32, i32, i32
  }
  func.func @transform_9(%arg0: i32, %arg1: i32) -> (i32, i32, i32) {
    %c0_i32 = arith.constant 0 : i32
    %c0_i32_0 = arith.constant 0 : i32
    %c0_i32_1 = arith.constant 0 : i32
    return %arg1, %c0_i32, %c0_i32_0 : i32, i32, i32
  }
  func.func @transform_10(%arg0: i32, %arg1: i32) -> (i32, i32, i32) {
    %c0_i32 = arith.constant 0 : i32
    %c0_i32_0 = arith.constant 0 : i32
    %c0_i32_1 = arith.constant 0 : i32
    return %arg1, %c0_i32, %c0_i32_0 : i32, i32, i32
  }
  func.func @transform_11(%arg0: i32, %arg1: i32) -> (i32, i32, i32) {
    %c0_i32 = arith.constant 0 : i32
    %c0_i32_0 = arith.constant 0 : i32
    %c0_i32_1 = arith.constant 0 : i32
    return %arg1, %c0_i32, %c0_i32_0 : i32, i32, i32
  }
  func.func @transform_12(%arg0: i32, %arg1: i32) -> (i32, i32, i32) {
    %c0_i32 = arith.constant 0 : i32
    %c0_i32_0 = arith.constant 0 : i32
    %c0_i32_1 = arith.constant 0 : i32
    return %arg1, %c0_i32, %c0_i32_0 : i32, i32, i32
  }
  func.func @transform_13(%arg0: i32, %arg1: i32) -> (i32, i32, i32) {
    %c0_i32 = arith.constant 0 : i32
    %c0_i32_0 = arith.constant 0 : i32
    %c0_i32_1 = arith.constant 0 : i32
    return %arg1, %c0_i32, %c0_i32_0 : i32, i32, i32
  }
  func.func @transform_14(%arg0: i32, %arg1: i32) -> (i32, i32, i32) {
    %c0_i32 = arith.constant 0 : i32
    %c0_i32_0 = arith.constant 0 : i32
    %c0_i32_1 = arith.constant 0 : i32
    return %arg1, %c0_i32, %c0_i32_0 : i32, i32, i32
  }
  func.func @transform_15(%arg0: i32, %arg1: i32) -> (i32, i32) {
    %c0_i32 = arith.constant 0 : i32
    %c0_i32_0 = arith.constant 0 : i32
    %c0_i32_1 = arith.constant 0 : i32
    return %c0_i32, %c0_i32_0 : i32, i32
  }
  func.func @transform_16(%arg0: i32, %arg1: i32) -> (i32, i32) {
    %c0_i32 = arith.constant 0 : i32
    %c0_i32_0 = arith.constant 0 : i32
    %c0_i32_1 = arith.constant 0 : i32
    return %c0_i32, %c0_i32_0 : i32, i32
  }
  func.func @transform_17(%arg0: i32, %arg1: i32) -> (i32, i32, i32) {
    %c0_i32 = arith.constant 0 : i32
    %c0_i32_0 = arith.constant 0 : i32
    %c0_i32_1 = arith.constant 0 : i32
    return %arg0, %c0_i32, %c0_i32_0 : i32, i32, i32
  }
}

</mosaic_0001>

<llo_original>
// kernel: encoder_forward.1
$region0: #{encoder_forward.1}
  #allocation0 [shape = 'u32[]', space=smem, size = 0x4, offset = 0x4, fixed_abs, tag = 'smem constant byte address 0x4 - core index']
  #allocation1 [shape = 'u32[72,128]{1,0:T(1,128)}', space=vmem, size = 0x9000, scoped, tag = 'internal scratch']
  #allocation2 [shape = 'f32[8,32]{1,0:T(8,128)}', space=vmem, size = 0x1000, scoped, tag = 'scratch operand']
  %s0 = inlined_call_operand.vmem [shape: f32[2,8,32], index: 0, kind: input, shape index: {}]
  %s1 = inlined_call_operand.vmem [shape: f32[1,8,32], index: 1, kind: input, shape index: {}]
  %s2 = inlined_call_operand.vmem [shape: f32[2,1,8], index: 2, kind: input, shape index: {}]
  %s3 = inlined_call_operand.vmem [shape: bf16[2,32,96], index: 3, kind: input, shape index: {}]
  %s4 = inlined_call_operand.vmem [shape: f32[2,1,96], index: 4, kind: input, shape index: {}]
  %s5 = inlined_call_operand.vmem [shape: bf16[2,32,32], index: 5, kind: input, shape index: {}]
  %s6 = inlined_call_operand.vmem [shape: f32[2,1,32], index: 6, kind: input, shape index: {}]
  %s7 = inlined_call_operand.vmem [shape: f32[2,1,32], index: 7, kind: input, shape index: {}]
  %s8 = inlined_call_operand.vmem [shape: f32[2,1,32], index: 8, kind: input, shape index: {}]
  %s9 = inlined_call_operand.vmem [shape: f32[2,1,32], index: 9, kind: input, shape index: {}]
  %s10 = inlined_call_operand.vmem [shape: f32[2,1,32], index: 10, kind: input, shape index: {}]
  %s11 = inlined_call_operand.vmem [shape: bf16[2,32,64], index: 11, kind: input, shape index: {}]
  %s12 = inlined_call_operand.vmem [shape: f32[2,1,64], index: 12, kind: input, shape index: {}]
  %s13 = inlined_call_operand.vmem [shape: bf16[2,64,32], index: 13, kind: input, shape index: {}]
  %s14 = inlined_call_operand.vmem [shape: f32[2,1,32], index: 14, kind: input, shape index: {}]
  %s15 = inlined_call_operand.vmem [shape: f32[1,32], index: 15, kind: input, shape index: {}]
  %s16 = inlined_call_operand.vmem [shape: f32[1,32], index: 16, kind: input, shape index: {}]
  %s17 = inlined_call_operand.hbm [shape: f32[2,8,32], index: 17, kind: output, shape index: {}]
  %s18 = sld [smem:[#allocation0]]
  $region109: #{encoder_forward.1} parent=0
    _
  %s20 = ssub.s32 1, %s18
  %s21 = scalar_select 0, %s20, %s18
  $region1: #{encoder_forward.1} parent=0
    #allocation3 [shape = 'u8[8192]{0}', space=vmem, size = 0x2000, scoped, tag = 'output window, operand 0']
    #allocation4 [shape = 's32[2]{0}', space=sflag, size = 0x8, scoped, tag = 'scoped memory for encoder_forward.1']
    %22 = vsyncpa [#allocation4], 0
    %s23 = scalar_lea.sflag [#allocation4], 1
    %24 = vsyncpa %s23, 0
    loop: start=0, step=1, limit=6
    $region2: #{encoder_forward.1} parent=1 // loop_pre_header
      _
    $region3: #{encoder_forward.1} parent=1 // loop_header
      %s26 = sphi 0, %s30
      %p27 = scmp.ge.s32.totalorder %s26, 6
      %s33 = sphi 0, %s45
      %s34 = sphi 0, %s41
      %s35 = sphi 0, %s33
      %s36 = sphi 0, %s34
      %s37 = sphi 0, %s35
      %s38 = sphi 0, %s36
      %s48 = sphi 0, %s50
      %s51 = sphi 0, %s48
      %s52 = sphi 0, %s51
      %s68 = sphi 0, %s52
      %s72 = sphi 0, %s72
      %s74 = sphi 0, %s72
      %s75 = sphi 0, %s74
      %s89 = sphi 0, %s75
      %s95 = sphi 0, %s97
      %s98 = sphi 0, %s95
      %s99 = sphi 0, %s98
      %s115 = sphi 0, %s99
      %s121 = sphi 0, %s123
      %s124 = sphi 0, %s121
      %s125 = sphi 0, %s124
      %s141 = sphi 0, %s125
      %s147 = sphi 0, %s149
      %s150 = sphi 0, %s147
      %s151 = sphi 0, %s150
      %s167 = sphi 0, %s151
      %s173 = sphi 0, %s175
      %s176 = sphi 0, %s173
      %s177 = sphi 0, %s176
      %s193 = sphi 0, %s177
      %s199 = sphi 0, %s201
      %s202 = sphi 0, %s199
      %s203 = sphi 0, %s202
      %s219 = sphi 0, %s203
      %s225 = sphi 0, %s227
      %s228 = sphi 0, %s225
      %s229 = sphi 0, %s228
      %s245 = sphi 0, %s229
      %s251 = sphi 0, %s253
      %s254 = sphi 0, %s251
      %s255 = sphi 0, %s254
      %s271 = sphi 0, %s255
      %s277 = sphi 0, %s279
      %s280 = sphi 0, %s277
      %s281 = sphi 0, %s280
      %s297 = sphi 0, %s281
      %s303 = sphi 0, %s305
      %s306 = sphi 0, %s303
      %s307 = sphi 0, %s306
      %s323 = sphi 0, %s307
      %s329 = sphi 0, %s331
      %s332 = sphi 0, %s329
      %s333 = sphi 0, %s332
      %s349 = sphi 0, %s333
      %s355 = sphi 0, %s357
      %s358 = sphi 0, %s355
      %s359 = sphi 0, %s358
      %s375 = sphi 0, %s359
      %s381 = sphi 0, %s383
      %s384 = sphi 0, %s381
      %s385 = sphi 0, %s384
      %s401 = sphi 0, %s385
      %s407 = sphi 0, %s409
      %s410 = sphi 0, %s407
      %s411 = sphi 0, %s410
      %s427 = sphi 0, %s411
      %s431 = sphi 0, %s431
      %s433 = sphi 0, %s431
      %s434 = sphi 0, %s433
      %s448 = sphi 0, %s434
      %s452 = sphi 0, %s452
      %s454 = sphi 0, %s452
      %s455 = sphi 0, %s454
      %s469 = sphi 0, %s455
      %s475 = sphi 0, %s477
      %s478 = sphi 0, %s475
      %s479 = sphi 0, %s478
      %s495 = sphi 0, %s479
    $region4: #{encoder_forward.1} parent=1 // loop_header_branch
      %29 = sbr.rel (%p27) target = $region8
    $region5: #{encoder_forward.1} parent=1 // loop_body
      %s31 = ssub.s32 %s26, 1
      %s32 = ssub.s32 %s26, 2
      %s39 = sadd.s32 1, %s34
      %p40 = scmp.ge.s32.totalorder %s39, 2
      %s41 = scalar_select %p40, 0, %s39
      %s42 = sadd.s32 1, %s33
      %s43 = scalar_select %p40, %s42, %s33
      %p44 = scmp.ge.s32.totalorder %s43, 2
      %s45 = scalar_select %p44, 0, %s43
      %s46 = ssub.s32 %s33, %s45
      %p47 = scmp.eq.s32.totalorder %s46, 0
      %s49 = sadd.s32 %s48, 1
      %s50 = scalar_select %p47, %s48, %s49
      %p53 = pneg %p47
      %p54 = scmp.eq.s32.totalorder %s26, 3
      %p55 = por %p53, %p54
      %p56 = scmp.ne.s32.totalorder %s48, %s51
      %p57 = scmp.eq.s32.totalorder %s26, 0
      %p58 = por %p56, %p57
      %p59 = scmp.ne.s32.totalorder %s48, %s51
      %p60 = scmp.eq.s32.totalorder %s31, 3
      %p61 = por %p59, %p60
      %p62 = scmp.ne.s32.totalorder %s51, %s52
      %p63 = scmp.eq.s32.totalorder %s31, 0
      %p64 = por %p62, %p63
      %p65 = scmp.ne.s32.totalorder %s51, %s52
      %p66 = scmp.eq.s32.totalorder %s32, 3
      %p67 = por %p65, %p66
      %p69 = scmp.ne.s32.totalorder %s52, %s68
      %p70 = scmp.eq.s32.totalorder %s32, 0
      %p71 = por %p69, %p70
      %s73 = sadd.s32 %s72, 1
      %p76 = scmp.eq.s32.totalorder %s26, 3
      %p77 = scmp.ne.s32.totalorder %s72, %s74
      %p78 = scmp.eq.s32.totalorder %s26, 0
      %p79 = por %p77, %p78
      %p80 = scmp.ne.s32.totalorder %s72, %s74
      %p81 = scmp.eq.s32.totalorder %s31, 3
      %p82 = por %p80, %p81
      %p83 = scmp.ne.s32.totalorder %s74, %s75
      %p84 = scmp.eq.s32.totalorder %s31, 0
      %p85 = por %p83, %p84
      %p86 = scmp.ne.s32.totalorder %s74, %s75
      %p87 = scmp.eq.s32.totalorder %s32, 3
      %p88 = por %p86, %p87
      %p90 = scmp.ne.s32.totalorder %s75, %s89
      %p91 = scmp.eq.s32.totalorder %s32, 0
      %p92 = por %p90, %p91
      %s93 = ssub.s32 %s33, %s45
      %p94 = scmp.eq.s32.totalorder %s93, 0
      %s96 = sadd.s32 %s95, 1
      %s97 = scalar_select %p94, %s95, %s96
      %p100 = pneg %p94
      %p101 = scmp.eq.s32.totalorder %s26, 3
      %p102 = por %p100, %p101
      %p103 = scmp.ne.s32.totalorder %s95, %s98
      %p104 = scmp.eq.s32.totalorder %s26, 0
      %p105 = por %p103, %p104
      %p106 = scmp.ne.s32.totalorder %s95, %s98
      %p107 = scmp.eq.s32.totalorder %s31, 3
      %p108 = por %p106, %p107
      %p109 = scmp.ne.s32.totalorder %s98, %s99
      %p110 = scmp.eq.s32.totalorder %s31, 0
      %p111 = por %p109, %p110
      %p112 = scmp.ne.s32.totalorder %s98, %s99
      %p113 = scmp.eq.s32.totalorder %s32, 3
      %p114 = por %p112, %p113
      %p116 = scmp.ne.s32.totalorder %s99, %s115
      %p117 = scmp.eq.s32.totalorder %s32, 0
      %p118 = por %p116, %p117
      %s119 = ssub.s32 %s34, %s41
      %p120 = scmp.eq.s32.totalorder %s119, 0
      %s122 = sadd.s32 %s121, 1
      %s123 = scalar_select %p120, %s121, %s122
      %p126 = pneg %p120
      %p127 = scmp.eq.s32.totalorder %s26, 3
      %p128 = por %p126, %p127
      %p129 = scmp.ne.s32.totalorder %s121, %s124
      %p130 = scmp.eq.s32.totalorder %s26, 0
      %p131 = por %p129, %p130
      %p132 = scmp.ne.s32.totalorder %s121, %s124
      %p133 = scmp.eq.s32.totalorder %s31, 3
      %p134 = por %p132, %p133
      %p135 = scmp.ne.s32.totalorder %s124, %s125
      %p136 = scmp.eq.s32.totalorder %s31, 0
      %p137 = por %p135, %p136
      %p138 = scmp.ne.s32.totalorder %s124, %s125
      %p139 = scmp.eq.s32.totalorder %s32, 3
      %p140 = por %p138, %p139
      %p142 = scmp.ne.s32.totalorder %s125, %s141
      %p143 = scmp.eq.s32.totalorder %s32, 0
      %p144 = por %p142, %p143
      %s145 = ssub.s32 %s34, %s41
      %p146 = scmp.eq.s32.totalorder %s145, 0
      %s148 = sadd.s32 %s147, 1
      %s149 = scalar_select %p146, %s147, %s148
      %p152 = pneg %p146
      %p153 = scmp.eq.s32.totalorder %s26, 3
      %p154 = por %p152, %p153
      %p155 = scmp.ne.s32.totalorder %s147, %s150
      %p156 = scmp.eq.s32.totalorder %s26, 0
      %p157 = por %p155, %p156
      %p158 = scmp.ne.s32.totalorder %s147, %s150
      %p159 = scmp.eq.s32.totalorder %s31, 3
      %p160 = por %p158, %p159
      %p161 = scmp.ne.s32.totalorder %s150, %s151
      %p162 = scmp.eq.s32.totalorder %s31, 0
      %p163 = por %p161, %p162
      %p164 = scmp.ne.s32.totalorder %s150, %s151
      %p165 = scmp.eq.s32.totalorder %s32, 3
      %p166 = por %p164, %p165
      %p168 = scmp.ne.s32.totalorder %s151, %s167
      %p169 = scmp.eq.s32.totalorder %s32, 0
      %p170 = por %p168, %p169
      %s171 = ssub.s32 %s34, %s41
      %p172 = scmp.eq.s32.totalorder %s171, 0
      %s174 = sadd.s32 %s173, 1
      %s175 = scalar_select %p172, %s173, %s174
      %p178 = pneg %p172
      %p179 = scmp.eq.s32.totalorder %s26, 3
      %p180 = por %p178, %p179
      %p181 = scmp.ne.s32.totalorder %s173, %s176
      %p182 = scmp.eq.s32.totalorder %s26, 0
      %p183 = por %p181, %p182
      %p184 = scmp.ne.s32.totalorder %s173, %s176
      %p185 = scmp.eq.s32.totalorder %s31, 3
      %p186 = por %p184, %p185
      %p187 = scmp.ne.s32.totalorder %s176, %s177
      %p188 = scmp.eq.s32.totalorder %s31, 0
      %p189 = por %p187, %p188
      %p190 = scmp.ne.s32.totalorder %s176, %s177
      %p191 = scmp.eq.s32.totalorder %s32, 3
      %p192 = por %p190, %p191
      %p194 = scmp.ne.s32.totalorder %s177, %s193
      %p195 = scmp.eq.s32.totalorder %s32, 0
      %p196 = por %p194, %p195
      %s197 = ssub.s32 %s34, %s41
      %p198 = scmp.eq.s32.totalorder %s197, 0
      %s200 = sadd.s32 %s199, 1
      %s201 = scalar_select %p198, %s199, %s200
      %p204 = pneg %p198
      %p205 = scmp.eq.s32.totalorder %s26, 3
      %p206 = por %p204, %p205
      %p207 = scmp.ne.s32.totalorder %s199, %s202
      %p208 = scmp.eq.s32.totalorder %s26, 0
      %p209 = por %p207, %p208
      %p210 = scmp.ne.s32.totalorder %s199, %s202
      %p211 = scmp.eq.s32.totalorder %s31, 3
      %p212 = por %p210, %p211
      %p213 = scmp.ne.s32.totalorder %s202, %s203
      %p214 = scmp.eq.s32.totalorder %s31, 0
      %p215 = por %p213, %p214
      %p216 = scmp.ne.s32.totalorder %s202, %s203
      %p217 = scmp.eq.s32.totalorder %s32, 3
      %p218 = por %p216, %p217
      %p220 = scmp.ne.s32.totalorder %s203, %s219
      %p221 = scmp.eq.s32.totalorder %s32, 0
      %p222 = por %p220, %p221
      %s223 = ssub.s32 %s34, %s41
      %p224 = scmp.eq.s32.totalorder %s223, 0
      %s226 = sadd.s32 %s225, 1
      %s227 = scalar_select %p224, %s225, %s226
      %p230 = pneg %p224
      %p231 = scmp.eq.s32.totalorder %s26, 3
      %p232 = por %p230, %p231
      %p233 = scmp.ne.s32.totalorder %s225, %s228
      %p234 = scmp.eq.s32.totalorder %s26, 0
      %p235 = por %p233, %p234
      %p236 = scmp.ne.s32.totalorder %s225, %s228
      %p237 = scmp.eq.s32.totalorder %s31, 3
      %p238 = por %p236, %p237
      %p239 = scmp.ne.s32.totalorder %s228, %s229
      %p240 = scmp.eq.s32.totalorder %s31, 0
      %p241 = por %p239, %p240
      %p242 = scmp.ne.s32.totalorder %s228, %s229
      %p243 = scmp.eq.s32.totalorder %s32, 3
      %p244 = por %p242, %p243
      %p246 = scmp.ne.s32.totalorder %s229, %s245
      %p247 = scmp.eq.s32.totalorder %s32, 0
      %p248 = por %p246, %p247
      %s249 = ssub.s32 %s34, %s41
      %p250 = scmp.eq.s32.totalorder %s249, 0
      %s252 = sadd.s32 %s251, 1
      %s253 = scalar_select %p250, %s251, %s252
      %p256 = pneg %p250
      %p257 = scmp.eq.s32.totalorder %s26, 3
      %p258 = por %p256, %p257
      %p259 = scmp.ne.s32.totalorder %s251, %s254
      %p260 = scmp.eq.s32.totalorder %s26, 0
      %p261 = por %p259, %p260
      %p262 = scmp.ne.s32.totalorder %s251, %s254
      %p263 = scmp.eq.s32.totalorder %s31, 3
      %p264 = por %p262, %p263
      %p265 = scmp.ne.s32.totalorder %s254, %s255
      %p266 = scmp.eq.s32.totalorder %s31, 0
      %p267 = por %p265, %p266
      %p268 = scmp.ne.s32.totalorder %s254, %s255
      %p269 = scmp.eq.s32.totalorder %s32, 3
      %p270 = por %p268, %p269
      %p272 = scmp.ne.s32.totalorder %s255, %s271
      %p273 = scmp.eq.s32.totalorder %s32, 0
      %p274 = por %p272, %p273
      %s275 = ssub.s32 %s34, %s41
      %p276 = scmp.eq.s32.totalorder %s275, 0
      %s278 = sadd.s32 %s277, 1
      %s279 = scalar_select %p276, %s277, %s278
      %p282 = pneg %p276
      %p283 = scmp.eq.s32.totalorder %s26, 3
      %p284 = por %p282, %p283
      %p285 = scmp.ne.s32.totalorder %s277, %s280
      %p286 = scmp.eq.s32.totalorder %s26, 0
      %p287 = por %p285, %p286
      %p288 = scmp.ne.s32.totalorder %s277, %s280
      %p289 = scmp.eq.s32.totalorder %s31, 3
      %p290 = por %p288, %p289
      %p291 = scmp.ne.s32.totalorder %s280, %s281
      %p292 = scmp.eq.s32.totalorder %s31, 0
      %p293 = por %p291, %p292
      %p294 = scmp.ne.s32.totalorder %s280, %s281
      %p295 = scmp.eq.s32.totalorder %s32, 3
      %p296 = por %p294, %p295
      %p298 = scmp.ne.s32.totalorder %s281, %s297
      %p299 = scmp.eq.s32.totalorder %s32, 0
      %p300 = por %p298, %p299
      %s301 = ssub.s32 %s34, %s41
      %p302 = scmp.eq.s32.totalorder %s301, 0
      %s304 = sadd.s32 %s303, 1
      %s305 = scalar_select %p302, %s303, %s304
      %p308 = pneg %p302
      %p309 = scmp.eq.s32.totalorder %s26, 3
      %p310 = por %p308, %p309
      %p311 = scmp.ne.s32.totalorder %s303, %s306
      %p312 = scmp.eq.s32.totalorder %s26, 0
      %p313 = por %p311, %p312
      %p314 = scmp.ne.s32.totalorder %s303, %s306
      %p315 = scmp.eq.s32.totalorder %s31, 3
      %p316 = por %p314, %p315
      %p317 = scmp.ne.s32.totalorder %s306, %s307
      %p318 = scmp.eq.s32.totalorder %s31, 0
      %p319 = por %p317, %p318
      %p320 = scmp.ne.s32.totalorder %s306, %s307
      %p321 = scmp.eq.s32.totalorder %s32, 3
      %p322 = por %p320, %p321
      %p324 = scmp.ne.s32.totalorder %s307, %s323
      %p325 = scmp.eq.s32.totalorder %s32, 0
      %p326 = por %p324, %p325
      %s327 = ssub.s32 %s34, %s41
      %p328 = scmp.eq.s32.totalorder %s327, 0
      %s330 = sadd.s32 %s329, 1
      %s331 = scalar_select %p328, %s329, %s330
      %p334 = pneg %p328
      %p335 = scmp.eq.s32.totalorder %s26, 3
      %p336 = por %p334, %p335
      %p337 = scmp.ne.s32.totalorder %s329, %s332
      %p338 = scmp.eq.s32.totalorder %s26, 0
      %p339 = por %p337, %p338
      %p340 = scmp.ne.s32.totalorder %s329, %s332
      %p341 = scmp.eq.s32.totalorder %s31, 3
      %p342 = por %p340, %p341
      %p343 = scmp.ne.s32.totalorder %s332, %s333
      %p344 = scmp.eq.s32.totalorder %s31, 0
      %p345 = por %p343, %p344
      %p346 = scmp.ne.s32.totalorder %s332, %s333
      %p347 = scmp.eq.s32.totalorder %s32, 3
      %p348 = por %p346, %p347
      %p350 = scmp.ne.s32.totalorder %s333, %s349
      %p351 = scmp.eq.s32.totalorder %s32, 0
      %p352 = por %p350, %p351
      %s353 = ssub.s32 %s34, %s41
      %p354 = scmp.eq.s32.totalorder %s353, 0
      %s356 = sadd.s32 %s355, 1
      %s357 = scalar_select %p354, %s355, %s356
      %p360 = pneg %p354
      %p361 = scmp.eq.s32.totalorder %s26, 3
      %p362 = por %p360, %p361
      %p363 = scmp.ne.s32.totalorder %s355, %s358
      %p364 = scmp.eq.s32.totalorder %s26, 0
      %p365 = por %p363, %p364
      %p366 = scmp.ne.s32.totalorder %s355, %s358
      %p367 = scmp.eq.s32.totalorder %s31, 3
      %p368 = por %p366, %p367
      %p369 = scmp.ne.s32.totalorder %s358, %s359
      %p370 = scmp.eq.s32.totalorder %s31, 0
      %p371 = por %p369, %p370
      %p372 = scmp.ne.s32.totalorder %s358, %s359
      %p373 = scmp.eq.s32.totalorder %s32, 3
      %p374 = por %p372, %p373
      %p376 = scmp.ne.s32.totalorder %s359, %s375
      %p377 = scmp.eq.s32.totalorder %s32, 0
      %p378 = por %p376, %p377
      %s379 = ssub.s32 %s34, %s41
      %p380 = scmp.eq.s32.totalorder %s379, 0
      %s382 = sadd.s32 %s381, 1
      %s383 = scalar_select %p380, %s381, %s382
      %p386 = pneg %p380
      %p387 = scmp.eq.s32.totalorder %s26, 3
      %p388 = por %p386, %p387
      %p389 = scmp.ne.s32.totalorder %s381, %s384
      %p390 = scmp.eq.s32.totalorder %s26, 0
      %p391 = por %p389, %p390
      %p392 = scmp.ne.s32.totalorder %s381, %s384
      %p393 = scmp.eq.s32.totalorder %s31, 3
      %p394 = por %p392, %p393
      %p395 = scmp.ne.s32.totalorder %s384, %s385
      %p396 = scmp.eq.s32.totalorder %s31, 0
      %p397 = por %p395, %p396
      %p398 = scmp.ne.s32.totalorder %s384, %s385
      %p399 = scmp.eq.s32.totalorder %s32, 3
      %p400 = por %p398, %p399
      %p402 = scmp.ne.s32.totalorder %s385, %s401
      %p403 = scmp.eq.s32.totalorder %s32, 0
      %p404 = por %p402, %p403
      %s405 = ssub.s32 %s34, %s41
      %p406 = scmp.eq.s32.totalorder %s405, 0
      %s408 = sadd.s32 %s407, 1
      %s409 = scalar_select %p406, %s407, %s408
      %p412 = pneg %p406
      %p413 = scmp.eq.s32.totalorder %s26, 3
      %p414 = por %p412, %p413
      %p415 = scmp.ne.s32.totalorder %s407, %s410
      %p416 = scmp.eq.s32.totalorder %s26, 0
      %p417 = por %p415, %p416
      %p418 = scmp.ne.s32.totalorder %s407, %s410
      %p419 = scmp.eq.s32.totalorder %s31, 3
      %p420 = por %p418, %p419
      %p421 = scmp.ne.s32.totalorder %s410, %s411
      %p422 = scmp.eq.s32.totalorder %s31, 0
      %p423 = por %p421, %p422
      %p424 = scmp.ne.s32.totalorder %s410, %s411
      %p425 = scmp.eq.s32.totalorder %s32, 3
      %p426 = por %p424, %p425
      %p428 = scmp.ne.s32.totalorder %s411, %s427
      %p429 = scmp.eq.s32.totalorder %s32, 0
      %p430 = por %p428, %p429
      %s432 = sadd.s32 %s431, 1
      %p435 = scmp.eq.s32.totalorder %s26, 3
      %p436 = scmp.ne.s32.totalorder %s431, %s433
      %p437 = scmp.eq.s32.totalorder %s26, 0
      %p438 = por %p436, %p437
      %p439 = scmp.ne.s32.totalorder %s431, %s433
      %p440 = scmp.eq.s32.totalorder %s31, 3
      %p441 = por %p439, %p440
      %p442 = scmp.ne.s32.totalorder %s433, %s434
      %p443 = scmp.eq.s32.totalorder %s31, 0
      %p444 = por %p442, %p443
      %p445 = scmp.ne.s32.totalorder %s433, %s434
      %p446 = scmp.eq.s32.totalorder %s32, 3
      %p447 = por %p445, %p446
      %p449 = scmp.ne.s32.totalorder %s434, %s448
      %p450 = scmp.eq.s32.totalorder %s32, 0
      %p451 = por %p449, %p450
      %s453 = sadd.s32 %s452, 1
      %p456 = scmp.eq.s32.totalorder %s26, 3
      %p457 = scmp.ne.s32.totalorder %s452, %s454
      %p458 = scmp.eq.s32.totalorder %s26, 0
      %p459 = por %p457, %p458
      %p460 = scmp.ne.s32.totalorder %s452, %s454
      %p461 = scmp.eq.s32.totalorder %s31, 3
      %p462 = por %p460, %p461
      %p463 = scmp.ne.s32.totalorder %s454, %s455
      %p464 = scmp.eq.s32.totalorder %s31, 0
      %p465 = por %p463, %p464
      %p466 = scmp.ne.s32.totalorder %s454, %s455
      %p467 = scmp.eq.s32.totalorder %s32, 3
      %p468 = por %p466, %p467
      %p470 = scmp.ne.s32.totalorder %s455, %s469
      %p471 = scmp.eq.s32.totalorder %s32, 0
      %p472 = por %p470, %p471
      %s473 = ssub.s32 %s33, %s45
      %p474 = scmp.eq.s32.totalorder %s473, 0
      %s476 = sadd.s32 %s475, 1
      %s477 = scalar_select %p474, %s475, %s476
      %p480 = pneg %p474
      %p481 = scmp.eq.s32.totalorder %s26, 3
      %p482 = por %p480, %p481
      %p483 = scmp.ne.s32.totalorder %s475, %s478
      %p484 = scmp.eq.s32.totalorder %s26, 0
      %p485 = por %p483, %p484
      %p486 = scmp.ne.s32.totalorder %s475, %s478
      %p487 = scmp.eq.s32.totalorder %s31, 3
      %p488 = por %p486, %p487
      %p489 = scmp.ne.s32.totalorder %s478, %s479
      %p490 = scmp.eq.s32.totalorder %s31, 0
      %p491 = por %p489, %p490
      %p492 = scmp.ne.s32.totalorder %s478, %s479
      %p493 = scmp.eq.s32.totalorder %s32, 3
      %p494 = por %p492, %p493
      %p496 = scmp.ne.s32.totalorder %s479, %s495
      %p497 = scmp.eq.s32.totalorder %s32, 0
      %p498 = por %p496, %p497
      %p499 = scmp.le.s32.totalorder 1, %s26
      %p500 = scmp.lt.s32.totalorder %s26, 5
      %p501 = pnand %p499, %p500
      %p502 = pneg %p501
      // Predicated region
      $region9: #{encoder_forward.1} parent=5 // pred_check
        _
      $region10: #{encoder_forward.1} parent=5 // pred_check_branch
        %504 = sbr.rel (%p501) target = $region12
      $region11: #{encoder_forward.1} parent=5 // pred_region
        %s505 = ssub.s32 %s26, 1
        // Predicated region
        $region13: #{encoder_forward.1} parent=11 // pred_check
          %p506 = pneg %p85
        $region14: #{encoder_forward.1} parent=11 // pred_check_branch
          %508 = sbr.rel (%p506) target = $region16
        $region15: #{encoder_forward.1} parent=11 // pred_region
          _
        $region16: #{encoder_forward.1} parent=11 // pred_fallthru
          _
        // Predicated region
        $region17: #{encoder_forward.1} parent=11 // pred_check
          %p509 = pneg %p444
        $region18: #{encoder_forward.1} parent=11 // pred_check_branch
          %511 = sbr.rel (%p509) target = $region20
        $region19: #{encoder_forward.1} parent=11 // pred_region
          _
        $region20: #{encoder_forward.1} parent=11 // pred_fallthru
          _
        // Predicated region
        $region21: #{encoder_forward.1} parent=11 // pred_check
          %p512 = pneg %p465
        $region22: #{encoder_forward.1} parent=11 // pred_check_branch
          %514 = sbr.rel (%p512) target = $region24
        $region23: #{encoder_forward.1} parent=11 // pred_region
          _
        $region24: #{encoder_forward.1} parent=11 // pred_fallthru
          _
      $region12: #{encoder_forward.1} parent=5 // pred_fallthru
        _
      %p515 = scmp.lt.s32.totalorder %s26, 4
      // Predicated region
      $region25: #{encoder_forward.1} parent=5 // pred_check
        %p516 = pneg %p515
      $region26: #{encoder_forward.1} parent=5 // pred_check_branch
        %518 = sbr.rel (%p516) target = $region28
      $region27: #{encoder_forward.1} parent=5 // pred_region
        // Predicated region
        $region29: #{encoder_forward.1} parent=27 // pred_check
          %p519 = pneg %p58
        $region30: #{encoder_forward.1} parent=27 // pred_check_branch
          %521 = sbr.rel (%p519) target = $region32
        $region31: #{encoder_forward.1} parent=27 // pred_region
          %p522 = scmp.lt.s32.totalorder %s33, 1
          %s523 = scalar_select %p522, %s33, 1
          %s524 = smul.addr %s523, 8
          %s525 = scalar_lea.vmem %s0, %s524
        $region32: #{encoder_forward.1} parent=27 // pred_fallthru
          _
        // Predicated region
        $region33: #{encoder_forward.1} parent=27 // pred_check
          %p526 = pneg %p105
        $region34: #{encoder_forward.1} parent=27 // pred_check_branch
          %528 = sbr.rel (%p526) target = $region36
        $region35: #{encoder_forward.1} parent=27 // pred_region
          %p529 = scmp.lt.s32.totalorder %s33, 1
          %s530 = scalar_select %p529, %s33, 1
          %s531 = scalar_lea.vmem %s2, %s530
        $region36: #{encoder_forward.1} parent=27 // pred_fallthru
          _
        // Predicated region
        $region37: #{encoder_forward.1} parent=27 // pred_check
          %p532 = pneg %p131
        $region38: #{encoder_forward.1} parent=27 // pred_check_branch
          %534 = sbr.rel (%p532) target = $region40
        $region39: #{encoder_forward.1} parent=27 // pred_region
          %p535 = scmp.lt.s32.totalorder %s34, 1
          %s536 = scalar_select %p535, %s34, 1
          %s537 = smul.addr %s536, 4
          %s538 = smul.addr %s537, 4
          %s539 = scalar_lea.vmem %s3, %s538
        $region40: #{encoder_forward.1} parent=27 // pred_fallthru
          _
        // Predicated region
        $region41: #{encoder_forward.1} parent=27 // pred_check
          %p540 = pneg %p157
        $region42: #{encoder_forward.1} parent=27 // pred_check_branch
          %542 = sbr.rel (%p540) target = $region44
        $region43: #{encoder_forward.1} parent=27 // pred_region
          %p543 = scmp.lt.s32.totalorder %s34, 1
          %s544 = scalar_select %p543, %s34, 1
          %s545 = scalar_lea.vmem %s4, %s544
        $region44: #{encoder_forward.1} parent=27 // pred_fallthru
          _
        // Predicated region
        $region45: #{encoder_forward.1} parent=27 // pred_check
          %p546 = pneg %p183
        $region46: #{encoder_forward.1} parent=27 // pred_check_branch
          %548 = sbr.rel (%p546) target = $region48
        $region47: #{encoder_forward.1} parent=27 // pred_region
          %p549 = scmp.lt.s32.totalorder %s34, 1
          %s550 = scalar_select %p549, %s34, 1
          %s551 = smul.addr %s550, 4
          %s552 = smul.addr %s551, 4
          %s553 = scalar_lea.vmem %s5, %s552
        $region48: #{encoder_forward.1} parent=27 // pred_fallthru
          _
        // Predicated region
        $region49: #{encoder_forward.1} parent=27 // pred_check
          %p554 = pneg %p209
        $region50: #{encoder_forward.1} parent=27 // pred_check_branch
          %556 = sbr.rel (%p554) target = $region52
        $region51: #{encoder_forward.1} parent=27 // pred_region
          %p557 = scmp.lt.s32.totalorder %s34, 1
          %s558 = scalar_select %p557, %s34, 1
          %s559 = scalar_lea.vmem %s6, %s558
        $region52: #{encoder_forward.1} parent=27 // pred_fallthru
          _
        // Predicated region
        $region53: #{encoder_forward.1} parent=27 // pred_check
          %p560 = pneg %p235
        $region54: #{encoder_forward.1} parent=27 // pred_check_branch
          %562 = sbr.rel (%p560) target = $region56
        $region55: #{encoder_forward.1} parent=27 // pred_region
          %p563 = scmp.lt.s32.totalorder %s34, 1
          %s564 = scalar_select %p563, %s34, 1
          %s565 = scalar_lea.vmem %s7, %s564
        $region56: #{encoder_forward.1} parent=27 // pred_fallthru
          _
        // Predicated region
        $region57: #{encoder_forward.1} parent=27 // pred_check
          %p566 = pneg %p261
        $region58: #{encoder_forward.1} parent=27 // pred_check_branch
          %568 = sbr.rel (%p566) target = $region60
        $region59: #{encoder_forward.1} parent=27 // pred_region
          %p569 = scmp.lt.s32.totalorder %s34, 1
          %s570 = scalar_select %p569, %s34, 1
          %s571 = scalar_lea.vmem %s8, %s570
        $region60: #{encoder_forward.1} parent=27 // pred_fallthru
          _
        // Predicated region
        $region61: #{encoder_forward.1} parent=27 // pred_check
          %p572 = pneg %p287
        $region62: #{encoder_forward.1} parent=27 // pred_check_branch
          %574 = sbr.rel (%p572) target = $region64
        $region63: #{encoder_forward.1} parent=27 // pred_region
          %p575 = scmp.lt.s32.totalorder %s34, 1
          %s576 = scalar_select %p575, %s34, 1
          %s577 = scalar_lea.vmem %s9, %s576
        $region64: #{encoder_forward.1} parent=27 // pred_fallthru
          _
        // Predicated region
        $region65: #{encoder_forward.1} parent=27 // pred_check
          %p578 = pneg %p313
        $region66: #{encoder_forward.1} parent=27 // pred_check_branch
          %580 = sbr.rel (%p578) target = $region68
        $region67: #{encoder_forward.1} parent=27 // pred_region
          %p581 = scmp.lt.s32.totalorder %s34, 1
          %s582 = scalar_select %p581, %s34, 1
          %s583 = scalar_lea.vmem %s10, %s582
        $region68: #{encoder_forward.1} parent=27 // pred_fallthru
          _
        // Predicated region
        $region69: #{encoder_forward.1} parent=27 // pred_check
          %p584 = pneg %p339
        $region70: #{encoder_forward.1} parent=27 // pred_check_branch
          %586 = sbr.rel (%p584) target = $region72
        $region71: #{encoder_forward.1} parent=27 // pred_region
          %p587 = scmp.lt.s32.totalorder %s34, 1
          %s588 = scalar_select %p587, %s34, 1
          %s589 = smul.addr %s588, 4
          %s590 = smul.addr %s589, 4
          %s591 = scalar_lea.vmem %s11, %s590
        $region72: #{encoder_forward.1} parent=27 // pred_fallthru
          _
        // Predicated region
        $region73: #{encoder_forward.1} parent=27 // pred_check
          %p592 = pneg %p365
        $region74: #{encoder_forward.1} parent=27 // pred_check_branch
          %594 = sbr.rel (%p592) target = $region76
        $region75: #{encoder_forward.1} parent=27 // pred_region
          %p595 = scmp.lt.s32.totalorder %s34, 1
          %s596 = scalar_select %p595, %s34, 1
          %s597 = scalar_lea.vmem %s12, %s596
        $region76: #{encoder_forward.1} parent=27 // pred_fallthru
          _
        // Predicated region
        $region77: #{encoder_forward.1} parent=27 // pred_check
          %p598 = pneg %p391
        $region78: #{encoder_forward.1} parent=27 // pred_check_branch
          %600 = sbr.rel (%p598) target = $region80
        $region79: #{encoder_forward.1} parent=27 // pred_region
          %p601 = scmp.lt.s32.totalorder %s34, 1
          %s602 = scalar_select %p601, %s34, 1
          %s603 = smul.addr %s602, 8
          %s604 = smul.addr %s603, 4
          %s605 = scalar_lea.vmem %s13, %s604
        $region80: #{encoder_forward.1} parent=27 // pred_fallthru
          _
        // Predicated region
        $region81: #{encoder_forward.1} parent=27 // pred_check
          %p606 = pneg %p417
        $region82: #{encoder_forward.1} parent=27 // pred_check_branch
          %608 = sbr.rel (%p606) target = $region84
        $region83: #{encoder_forward.1} parent=27 // pred_region
          %p609 = scmp.lt.s32.totalorder %s34, 1
          %s610 = scalar_select %p609, %s34, 1
          %s611 = scalar_lea.vmem %s14, %s610
        $region84: #{encoder_forward.1} parent=27 // pred_fallthru
          _
      $region28: #{encoder_forward.1} parent=5 // pred_fallthru
        _
      %p612 = scmp.le.s32.totalorder 1, %s26
      %p613 = scmp.lt.s32.totalorder %s26, 5
      %p614 = pnand %p612, %p613
      %p615 = pneg %p614
      // Predicated region
      $region85: #{encoder_forward.1} parent=5 // pred_check
        _
      $region86: #{encoder_forward.1} parent=5 // pred_check_branch
        %617 = sbr.rel (%p614) target = $region88
      $region87: #{encoder_forward.1} parent=5 // pred_region
        %s618 = ssub.s32 %s26, 1
        %p619 = scmp.lt.s32.totalorder %s35, 1
        %s620 = scalar_select %p619, %s35, 1
        %s621 = smul.addr %s620, 8
        %s622 = scalar_lea.vmem %s0, %s621
        %p623 = pneg %p64
        %p624 = pneg %p61
        %p625 = pneg %p85
        %p626 = pneg %p82
        %p627 = scmp.lt.s32.totalorder %s35, 1
        %s628 = scalar_select %p627, %s35, 1
        %s629 = scalar_lea.vmem %s2, %s628
        %p630 = pneg %p111
        %p631 = pneg %p108
        %p632 = scmp.lt.s32.totalorder %s36, 1
        %s633 = scalar_select %p632, %s36, 1
        %s634 = smul.addr %s633, 4
        %s635 = smul.addr %s634, 4
        %s636 = scalar_lea.vmem %s3, %s635
        %p637 = pneg %p137
        %p638 = pneg %p134
        %p639 = scmp.lt.s32.totalorder %s36, 1
        %s640 = scalar_select %p639, %s36, 1
        %s641 = scalar_lea.vmem %s4, %s640
        %p642 = pneg %p163
        %p643 = pneg %p160
        %p644 = scmp.lt.s32.totalorder %s36, 1
        %s645 = scalar_select %p644, %s36, 1
        %s646 = smul.addr %s645, 4
        %s647 = smul.addr %s646, 4
        %s648 = scalar_lea.vmem %s5, %s647
        %p649 = pneg %p189
        %p650 = pneg %p186
        %p651 = scmp.lt.s32.totalorder %s36, 1
        %s652 = scalar_select %p651, %s36, 1
        %s653 = scalar_lea.vmem %s6, %s652
        %p654 = pneg %p215
        %p655 = pneg %p212
        %p656 = scmp.lt.s32.totalorder %s36, 1
        %s657 = scalar_select %p656, %s36, 1
        %s658 = scalar_lea.vmem %s7, %s657
        %p659 = pneg %p241
        %p660 = pneg %p238
        %p661 = scmp.lt.s32.totalorder %s36, 1
        %s662 = scalar_select %p661, %s36, 1
        %s663 = scalar_lea.vmem %s8, %s662
        %p664 = pneg %p267
        %p665 = pneg %p264
        %p666 = scmp.lt.s32.totalorder %s36, 1
        %s667 = scalar_select %p666, %s36, 1
        %s668 = scalar_lea.vmem %s9, %s667
        %p669 = pneg %p293
        %p670 = pneg %p290
        %p671 = scmp.lt.s32.totalorder %s36, 1
        %s672 = scalar_select %p671, %s36, 1
        %s673 = scalar_lea.vmem %s10, %s672
        %p674 = pneg %p319
        %p675 = pneg %p316
        %p676 = scmp.lt.s32.totalorder %s36, 1
        %s677 = scalar_select %p676, %s36, 1
        %s678 = smul.addr %s677, 4
        %s679 = smul.addr %s678, 4
        %s680 = scalar_lea.vmem %s11, %s679
        %p681 = pneg %p345
        %p682 = pneg %p342
        %p683 = scmp.lt.s32.totalorder %s36, 1
        %s684 = scalar_select %p683, %s36, 1
        %s685 = scalar_lea.vmem %s12, %s684
        %p686 = pneg %p371
        %p687 = pneg %p368
        %p688 = scmp.lt.s32.totalorder %s36, 1
        %s689 = scalar_select %p688, %s36, 1
        %s690 = smul.addr %s689, 8
        %s691 = smul.addr %s690, 4
        %s692 = scalar_lea.vmem %s13, %s691
        %p693 = pneg %p397
        %p694 = pneg %p394
        %p695 = scmp.lt.s32.totalorder %s36, 1
        %s696 = scalar_select %p695, %s36, 1
        %s697 = scalar_lea.vmem %s14, %s696
        %p698 = pneg %p423
        %p699 = pneg %p420
        %p700 = pneg %p444
        %p701 = pneg %p441
        %p702 = pneg %p465
        %p703 = pneg %p462
        %p704 = pneg %p491
        %p705 = pneg %p488
        %s706 = sand.u32 %s478, 1
        %s707 = scalar_lea.sflag [#allocation4], %s706
        %s708 = sand.u32 %s478, 1
        %s709 = smul.addr %s708, 8
        %s710 = scalar_lea.vmem [#allocation3], %s709
        %p711 = scmp.lt.s32.totalorder %s35, 1
        %s712 = scalar_select %p711, %s35, 1
        %s713 = smul.addr %s712, 8
        %s714 = scalar_lea.vmem %s0, %s713
        %p715 = scmp.lt.s32.totalorder %s35, 1
        %s716 = scalar_select %p715, %s35, 1
        %s717 = scalar_lea.vmem %s2, %s716
        %p718 = scmp.lt.s32.totalorder %s36, 1
        %s719 = scalar_select %p718, %s36, 1
        %s720 = smul.addr %s719, 4
        %s721 = smul.addr %s720, 4
        %s722 = scalar_lea.vmem %s3, %s721
        %p723 = scmp.lt.s32.totalorder %s36, 1
        %s724 = scalar_select %p723, %s36, 1
        %s725 = scalar_lea.vmem %s4, %s724
        %p726 = scmp.lt.s32.totalorder %s36, 1
        %s727 = scalar_select %p726, %s36, 1
        %s728 = smul.addr %s727, 4
        %s729 = smul.addr %s728, 4
        %s730 = scalar_lea.vmem %s5, %s729
        %p731 = scmp.lt.s32.totalorder %s36, 1
        %s732 = scalar_select %p731, %s36, 1
        %s733 = scalar_lea.vmem %s6, %s732
        %p734 = scmp.lt.s32.totalorder %s36, 1
        %s735 = scalar_select %p734, %s36, 1
        %s736 = scalar_lea.vmem %s7, %s735
        %p737 = scmp.lt.s32.totalorder %s36, 1
        %s738 = scalar_select %p737, %s36, 1
        %s739 = scalar_lea.vmem %s8, %s738
        %p740 = scmp.lt.s32.totalorder %s36, 1
        %s741 = scalar_select %p740, %s36, 1
        %s742 = scalar_lea.vmem %s9, %s741
        %p743 = scmp.lt.s32.totalorder %s36, 1
        %s744 = scalar_select %p743, %s36, 1
        %s745 = scalar_lea.vmem %s10, %s744
        %p746 = scmp.lt.s32.totalorder %s36, 1
        %s747 = scalar_select %p746, %s36, 1
        %s748 = smul.addr %s747, 4
        %s749 = smul.addr %s748, 4
        %s750 = scalar_lea.vmem %s11, %s749
        %p751 = scmp.lt.s32.totalorder %s36, 1
        %s752 = scalar_select %p751, %s36, 1
        %s753 = scalar_lea.vmem %s12, %s752
        %p754 = scmp.lt.s32.totalorder %s36, 1
        %s755 = scalar_select %p754, %s36, 1
        %s756 = smul.addr %s755, 8
        %s757 = smul.addr %s756, 4
        %s758 = scalar_lea.vmem %s13, %s757
        %p759 = scmp.lt.s32.totalorder %s36, 1
        %s760 = scalar_select %p759, %s36, 1
        %s761 = scalar_lea.vmem %s14, %s760
        %p763 = scmp.eq.s32.totalorder %s36, 0
        // Predicated region
        $region89: #{encoder_forward.1} parent=87 // pred_check
          %p764 = pneg %p763
        $region90: #{encoder_forward.1} parent=87 // pred_check_branch
          %766 = sbr.rel (%p764) target = $region92
        $region91: #{encoder_forward.1} parent=87 // pred_region
          %v767 = vld [vmem:[%s714] sm:$0xff]
          %v768 = vmul.f32 %v767, 5.656854
          %v769 = vld [vmem:[%s1] sm:$0xff]
          %v770 = vadd.f32 %v768, %v769
          %vm771 = vcmask 261120
          %772 = vst.msk [vmem:[#allocation2] sm:$0xff] %vm771, %v770
        $region92: #{encoder_forward.1} parent=87 // pred_fallthru
          _
        %v773 = vld [vmem:[#allocation2] sm:$0xff]
        %v774 = vld [vmem:[%s717] sm:$0x1]
        %v775 = vld [vmem:[%s736] sm:$0x1]
        %v776 = vld [vmem:[%s739] sm:$0x1]
        %vm777 = vcmask 261120
        %v778 = vsel %vm777, %v773, 0.0
        %779 = vadd.xlane.f32.xlu0 %v778
        %v780 = vpop.xlane.xlu0 %779
        %v781 = vrcp.pop 32.0
        %v782 = vmul.f32 32.0, %v781
        %v783 = vsub.f32 1.0, %v782
        %v784 = vmul.f32 %v781, %v783
        %v785 = vadd.f32 %v781, %v784
        %vm786 = vweird.f32 %v781
        %v787 = vsel %vm786, %v781, %v785
        %v788 = vmul.f32 %v780, %v787
        %v789 = vsub.f32 %v773, %v788
        %v790 = vmul.f32 %v789, %v789
        %v791 = vsel %vm777, %v790, 0.0
        %792 = vadd.xlane.f32.xlu0 %v791
        %v793 = vpop.xlane.xlu0 %792
        %v794 = vmul.f32 %v793, 0.032258064
        %v795 = vrsqrt.pop %v794
        %v796 = vmul.f32 %v795, %v794
        %v797 = vmul.f32 %v796, %v795
        %v798 = vmul.f32 0.5, %v797
        %v799 = vsub.f32 1.5, %v798
        %v800 = vmul.f32 %v795, %v799
        %v801 = vmul.f32 %v794, %v800
        %vm802 = vcmp.eq.f32.partialorder %v794, inf
        %v803 = vsel %vm802, %v794, %v801
        %vm804 = vcmp.eq.f32.partialorder %v794, 0.0
        %v805 = vand.u32 %v794, 2147483648
        %v806 = vsel %vm804, %v805, %v803
        %v807 = vadd.f32 %v806, 1e-06
        %v808 = vrcp.pop %v807
        %v810 = vperm.slane %v775, 0
        %v812 = vmul.f32 %v810, %v789
        %v813 = vmul.f32 %v812, %v808
        %v815 = vperm.slane %v776, 0
        %v817 = vadd.f32 %v813, %v815
        %v818 = vpack.c.bf16 %v817, %v817
        %v819 = vld [vmem:[%s722] sm:$0xf]
        %v820 = vld [vmem:[%s722 + $0x4] sm:$0xf]
        %v821 = vld [vmem:[%s722 + $0x8] sm:$0xf]
        %v822 = vld [vmem:[%s722 + $0xc] sm:$0xf]
        %v823 = vld [vmem:[%s725] sm:$0x1]
        %v825 = vperm.slane %v823, 0
        %v831 = vunpack.c.l.b16 %v819
        %v832 = vunpack.c.l.b16 %v820
        %v833 = vunpack.c.l.b16 %v821
        %v834 = vunpack.c.l.b16 %v822
        %v835 = vpack.c.b16 %v832, %v831
        %v836 = vpack.c.b16 %v834, %v833
        %v840 = vsel %vm777, %v818, 0
        %842 = vmatpush.bf16.msra.mxu0 0
        %843 = vmatpush.bf16.msra.mxu0 0
        %844 = vmatpush.bf16.msra.mxu0 0
        %845 = vmatpush.bf16.msra.mxu0 0
        %846 = vmatpush.bf16.msra.mxu0 0
        %847 = vmatpush.bf16.msra.mxu0 0
        %848 = vmatpush.bf16.msra.mxu0 %v836
        %849 = vmatpush.bf16.msra.mxu0 %v835
        %850 = vmatmul.bf16.gmra.mxu0 %v840
        %v851 = vpop.f32.mrf.mxu0
        %v852 = vadd.f32 %v825, %v851
        %v853 = vpop.f32.mrf.mxu0
        %854 = vdwg.mxu0
        %856 = vrot.lane.b32.xlu0 %v852, 120
        %v857 = vpop.permute.xlu0 %856
        %859 = vrot.lane.b32.xlu0 %v852, 112
        %v860 = vpop.permute.xlu0 %859
        %862 = vrot.lane.b32.xlu0 %v852, 104
        %v863 = vpop.permute.xlu0 %862
        %v865 = vrot.slane %v860, 4
        %vm866 = vcmask 1047556
        %v867 = vsel %vm866, %v865, %v852
        %v868 = vrot.slane %v852, 4
        %v869 = vsel %vm866, %v860, %v868
        %v871 = vunpack.c.l.s4 1983009808
        %v872 = vunpack.c.0.s8 %v871
        %v873 = vperm.slane %v867, %v872
        %v875 = vunpack.c.l.s4 1983009808
        %v876 = vunpack.c.0.s8 %v875
        %v877 = vperm.slane %v869, %v876
        %v878 = vrot.slane %v863, 4
        %v879 = vsel %vm866, %v878, %v857
        %v880 = vrot.slane %v857, 4
        %v881 = vsel %vm866, %v863, %v880
        %v883 = vunpack.c.l.s4 1983009808
        %v884 = vunpack.c.0.s8 %v883
        %v885 = vperm.slane %v879, %v884
        %v887 = vunpack.c.l.s4 1983009808
        %v888 = vunpack.c.0.s8 %v887
        %v889 = vperm.slane %v881, %v888
        %v890 = vrot.slane %v885, 4
        %v891 = vsel %vm866, %v890, %v873
        %v892 = vrot.slane %v873, 4
        %v893 = vsel %vm866, %v885, %v892
        %v895 = vunpack.c.l.s4 1934713408
        %v896 = vunpack.c.0.s8 %v895
        %v897 = vperm.slane %v891, %v896
        %v899 = vunpack.c.l.s4 1934713408
        %v900 = vunpack.c.0.s8 %v899
        %v901 = vperm.slane %v893, %v900
        %v902 = vrot.slane %v889, 4
        %v903 = vsel %vm866, %v902, %v877
        %v904 = vrot.slane %v877, 4
        %v905 = vsel %vm866, %v889, %v904
        %v907 = vunpack.c.l.s4 1934713408
        %v908 = vunpack.c.0.s8 %v907
        %v909 = vperm.slane %v903, %v908
        %v911 = vunpack.c.l.s4 1934713408
        %v912 = vunpack.c.0.s8 %v911
        %v913 = vperm.slane %v905, %v912
        %v914 = vrot.slane %v897, 4
        %v915 = vsel %vm866, 0.0, %v914
        %v916 = vrot.slane %v901, 4
        %v917 = vsel %vm866, 0.0, %v916
        %v918 = vrot.slane %v909, 4
        %v919 = vsel %vm866, 0.0, %v918
        %v920 = vrot.slane %v913, 4
        %v921 = vsel %vm866, 0.0, %v920
        %v922 = vsel %vm866, %v916, %v897
        %v924 = vunpack.c.l.s4 1983009808
        %v925 = vunpack.c.0.s8 %v924
        %v926 = vperm.slane %v922, %v925
        %v927 = vrot.slane %v917, 4
        %v928 = vsel %vm866, %v927, %v915
        %v930 = vunpack.c.l.s4 1983009808
        %v931 = vunpack.c.0.s8 %v930
        %v932 = vperm.slane %v928, %v931
        %v933 = vsel %vm866, %v920, %v909
        %v935 = vunpack.c.l.s4 1983009808
        %v936 = vunpack.c.0.s8 %v935
        %v937 = vperm.slane %v933, %v936
        %v938 = vrot.slane %v921, 4
        %v939 = vsel %vm866, %v938, %v919
        %v941 = vunpack.c.l.s4 1983009808
        %v942 = vunpack.c.0.s8 %v941
        %v943 = vperm.slane %v939, %v942
        %v944 = vrot.slane %v932, 4
        %v945 = vsel %vm866, %v944, %v926
        %v946 = vrot.slane %v926, 4
        %v947 = vsel %vm866, %v932, %v946
        %v949 = vunpack.c.l.s4 1934713408
        %v950 = vunpack.c.0.s8 %v949
        %v951 = vperm.slane %v945, %v950
        %v953 = vunpack.c.l.s4 1934713408
        %v954 = vunpack.c.0.s8 %v953
        %v955 = vperm.slane %v947, %v954
        %v956 = vrot.slane %v943, 4
        %v957 = vsel %vm866, %v956, %v937
        %v958 = vrot.slane %v937, 4
        %v959 = vsel %vm866, %v943, %v958
        %v961 = vunpack.c.l.s4 1934713408
        %v962 = vunpack.c.0.s8 %v961
        %v963 = vperm.slane %v957, %v962
        %v965 = vunpack.c.l.s4 1934713408
        %v966 = vunpack.c.0.s8 %v965
        %v967 = vperm.slane %v959, %v966
        %v968 = vrot.slane %v963, 4
        %v969 = vsel %vm866, %v968, %v951
        %v970 = vrot.slane %v951, 4
        %v971 = vsel %vm866, %v963, %v970
        %v972 = vrot.slane %v967, 4
        %v973 = vsel %vm866, %v972, %v955
        %v974 = vrot.slane %v955, 4
        %v975 = vsel %vm866, %v967, %v974
        %976 = vrot.lane.b32.xlu0 %v852, 96
        %v977 = vpop.permute.xlu0 %976
        %978 = vrot.lane.b32.xlu0 %v857, 96
        %v979 = vpop.permute.xlu0 %978
        %980 = vrot.lane.b32.xlu0 %v860, 96
        %v981 = vpop.permute.xlu0 %980
        %982 = vrot.lane.b32.xlu0 %v863, 96
        %v983 = vpop.permute.xlu0 %982
        %v988 = vrot.slane %v981, 4
        %v989 = vsel %vm866, %v988, %v977
        %v990 = vrot.slane %v977, 4
        %v991 = vsel %vm866, %v981, %v990
        %v993 = vunpack.c.l.s4 1983009808
        %v994 = vunpack.c.0.s8 %v993
        %v995 = vperm.slane %v989, %v994
        %v997 = vunpack.c.l.s4 1983009808
        %v998 = vunpack.c.0.s8 %v997
        %v999 = vperm.slane %v991, %v998
        %v1000 = vrot.slane %v983, 4
        %v1001 = vsel %vm866, %v1000, %v979
        %v1002 = vrot.slane %v979, 4
        %v1003 = vsel %vm866, %v983, %v1002
        %v1005 = vunpack.c.l.s4 1983009808
        %v1006 = vunpack.c.0.s8 %v1005
        %v1007 = vperm.slane %v1001, %v1006
        %v1009 = vunpack.c.l.s4 1983009808
        %v1010 = vunpack.c.0.s8 %v1009
        %v1011 = vperm.slane %v1003, %v1010
        %v1012 = vrot.slane %v1007, 4
        %v1013 = vsel %vm866, %v1012, %v995
        %v1014 = vrot.slane %v995, 4
        %v1015 = vsel %vm866, %v1007, %v1014
        %v1017 = vunpack.c.l.s4 1934713408
        %v1018 = vunpack.c.0.s8 %v1017
        %v1019 = vperm.slane %v1013, %v1018
        %v1021 = vunpack.c.l.s4 1934713408
        %v1022 = vunpack.c.0.s8 %v1021
        %v1023 = vperm.slane %v1015, %v1022
        %v1024 = vrot.slane %v1011, 4
        %v1025 = vsel %vm866, %v1024, %v999
        %v1026 = vrot.slane %v999, 4
        %v1027 = vsel %vm866, %v1011, %v1026
        %v1029 = vunpack.c.l.s4 1934713408
        %v1030 = vunpack.c.0.s8 %v1029
        %v1031 = vperm.slane %v1025, %v1030
        %v1033 = vunpack.c.l.s4 1934713408
        %v1034 = vunpack.c.0.s8 %v1033
        %v1035 = vperm.slane %v1027, %v1034
        %v1036 = vrot.slane %v1019, 4
        %v1037 = vsel %vm866, 0.0, %v1036
        %v1038 = vrot.slane %v1023, 4
        %v1039 = vsel %vm866, 0.0, %v1038
        %v1040 = vrot.slane %v1031, 4
        %v1041 = vsel %vm866, 0.0, %v1040
        %v1042 = vrot.slane %v1035, 4
        %v1043 = vsel %vm866, 0.0, %v1042
        %v1044 = vsel %vm866, %v1038, %v1019
        %v1046 = vunpack.c.l.s4 1983009808
        %v1047 = vunpack.c.0.s8 %v1046
        %v1048 = vperm.slane %v1044, %v1047
        %v1049 = vrot.slane %v1039, 4
        %v1050 = vsel %vm866, %v1049, %v1037
        %v1052 = vunpack.c.l.s4 1983009808
        %v1053 = vunpack.c.0.s8 %v1052
        %v1054 = vperm.slane %v1050, %v1053
        %v1055 = vsel %vm866, %v1042, %v1031
        %v1057 = vunpack.c.l.s4 1983009808
        %v1058 = vunpack.c.0.s8 %v1057
        %v1059 = vperm.slane %v1055, %v1058
        %v1060 = vrot.slane %v1043, 4
        %v1061 = vsel %vm866, %v1060, %v1041
        %v1063 = vunpack.c.l.s4 1983009808
        %v1064 = vunpack.c.0.s8 %v1063
        %v1065 = vperm.slane %v1061, %v1064
        %v1066 = vrot.slane %v1054, 4
        %v1067 = vsel %vm866, %v1066, %v1048
        %v1068 = vrot.slane %v1048, 4
        %v1069 = vsel %vm866, %v1054, %v1068
        %v1071 = vunpack.c.l.s4 1934713408
        %v1072 = vunpack.c.0.s8 %v1071
        %v1073 = vperm.slane %v1067, %v1072
        %v1075 = vunpack.c.l.s4 1934713408
        %v1076 = vunpack.c.0.s8 %v1075
        %v1077 = vperm.slane %v1069, %v1076
        %v1078 = vrot.slane %v1065, 4
        %v1079 = vsel %vm866, %v1078, %v1059
        %v1080 = vrot.slane %v1059, 4
        %v1081 = vsel %vm866, %v1065, %v1080
        %v1083 = vunpack.c.l.s4 1934713408
        %v1084 = vunpack.c.0.s8 %v1083
        %v1085 = vperm.slane %v1079, %v1084
        %v1087 = vunpack.c.l.s4 1934713408
        %v1088 = vunpack.c.0.s8 %v1087
        %v1089 = vperm.slane %v1081, %v1088
        %v1090 = vrot.slane %v1085, 4
        %v1091 = vsel %vm866, %v1090, %v1073
        %v1092 = vrot.slane %v1073, 4
        %v1093 = vsel %vm866, %v1085, %v1092
        %v1094 = vrot.slane %v1089, 4
        %v1095 = vsel %vm866, %v1094, %v1077
        %v1096 = vrot.slane %v1077, 4
        %v1097 = vsel %vm866, %v1089, %v1096
        %1098 = vrot.lane.b32.xlu0 %v852, 64
        %v1099 = vpop.permute.xlu0 %1098
        %1100 = vrot.lane.b32.xlu0 %v857, 64
        %v1101 = vpop.permute.xlu0 %1100
        %1102 = vrot.lane.b32.xlu0 %v860, 64
        %v1103 = vpop.permute.xlu0 %1102
        %1104 = vrot.lane.b32.xlu0 %v863, 64
        %v1105 = vpop.permute.xlu0 %1104
        %v1110 = vrot.slane %v1103, 4
        %v1111 = vsel %vm866, %v1110, %v1099
        %v1112 = vrot.slane %v1099, 4
        %v1113 = vsel %vm866, %v1103, %v1112
        %v1115 = vunpack.c.l.s4 1983009808
        %v1116 = vunpack.c.0.s8 %v1115
        %v1117 = vperm.slane %v1111, %v1116
        %v1119 = vunpack.c.l.s4 1983009808
        %v1120 = vunpack.c.0.s8 %v1119
        %v1121 = vperm.slane %v1113, %v1120
        %v1122 = vrot.slane %v1105, 4
        %v1123 = vsel %vm866, %v1122, %v1101
        %v1124 = vrot.slane %v1101, 4
        %v1125 = vsel %vm866, %v1105, %v1124
        %v1127 = vunpack.c.l.s4 1983009808
        %v1128 = vunpack.c.0.s8 %v1127
        %v1129 = vperm.slane %v1123, %v1128
        %v1131 = vunpack.c.l.s4 1983009808
        %v1132 = vunpack.c.0.s8 %v1131
        %v1133 = vperm.slane %v1125, %v1132
        %v1134 = vrot.slane %v1129, 4
        %v1135 = vsel %vm866, %v1134, %v1117
        %v1136 = vrot.slane %v1117, 4
        %v1137 = vsel %vm866, %v1129, %v1136
        %v1139 = vunpack.c.l.s4 1934713408
        %v1140 = vunpack.c.0.s8 %v1139
        %v1141 = vperm.slane %v1135, %v1140
        %v1143 = vunpack.c.l.s4 1934713408
        %v1144 = vunpack.c.0.s8 %v1143
        %v1145 = vperm.slane %v1137, %v1144
        %v1146 = vrot.slane %v1133, 4
        %v1147 = vsel %vm866, %v1146, %v1121
        %v1148 = vrot.slane %v1121, 4
        %v1149 = vsel %vm866, %v1133, %v1148
        %v1151 = vunpack.c.l.s4 1934713408
        %v1152 = vunpack.c.0.s8 %v1151
        %v1153 = vperm.slane %v1147, %v1152
        %v1155 = vunpack.c.l.s4 1934713408
        %v1156 = vunpack.c.0.s8 %v1155
        %v1157 = vperm.slane %v1149, %v1156
        %v1158 = vrot.slane %v1141, 4
        %v1159 = vsel %vm866, 0.0, %v1158
        %v1160 = vrot.slane %v1145, 4
        %v1161 = vsel %vm866, 0.0, %v1160
        %v1162 = vrot.slane %v1153, 4
        %v1163 = vsel %vm866, 0.0, %v1162
        %v1164 = vrot.slane %v1157, 4
        %v1165 = vsel %vm866, 0.0, %v1164
        %v1166 = vsel %vm866, %v1160, %v1141
        %v1168 = vunpack.c.l.s4 1983009808
        %v1169 = vunpack.c.0.s8 %v1168
        %v1170 = vperm.slane %v1166, %v1169
        %v1171 = vrot.slane %v1161, 4
        %v1172 = vsel %vm866, %v1171, %v1159
        %v1174 = vunpack.c.l.s4 1983009808
        %v1175 = vunpack.c.0.s8 %v1174
        %v1176 = vperm.slane %v1172, %v1175
        %v1177 = vsel %vm866, %v1164, %v1153
        %v1179 = vunpack.c.l.s4 1983009808
        %v1180 = vunpack.c.0.s8 %v1179
        %v1181 = vperm.slane %v1177, %v1180
        %v1182 = vrot.slane %v1165, 4
        %v1183 = vsel %vm866, %v1182, %v1163
        %v1185 = vunpack.c.l.s4 1983009808
        %v1186 = vunpack.c.0.s8 %v1185
        %v1187 = vperm.slane %v1183, %v1186
        %v1188 = vrot.slane %v1176, 4
        %v1189 = vsel %vm866, %v1188, %v1170
        %v1190 = vrot.slane %v1170, 4
        %v1191 = vsel %vm866, %v1176, %v1190
        %v1193 = vunpack.c.l.s4 1934713408
        %v1194 = vunpack.c.0.s8 %v1193
        %v1195 = vperm.slane %v1189, %v1194
        %v1197 = vunpack.c.l.s4 1934713408
        %v1198 = vunpack.c.0.s8 %v1197
        %v1199 = vperm.slane %v1191, %v1198
        %v1200 = vrot.slane %v1187, 4
        %v1201 = vsel %vm866, %v1200, %v1181
        %v1202 = vrot.slane %v1181, 4
        %v1203 = vsel %vm866, %v1187, %v1202
        %v1205 = vunpack.c.l.s4 1934713408
        %v1206 = vunpack.c.0.s8 %v1205
        %v1207 = vperm.slane %v1201, %v1206
        %v1209 = vunpack.c.l.s4 1934713408
        %v1210 = vunpack.c.0.s8 %v1209
        %v1211 = vperm.slane %v1203, %v1210
        %v1212 = vrot.slane %v1207, 4
        %v1213 = vsel %vm866, %v1212, %v1195
        %v1214 = vrot.slane %v1195, 4
        %v1215 = vsel %vm866, %v1207, %v1214
        %v1216 = vrot.slane %v1211, 4
        %v1217 = vsel %vm866, %v1216, %v1199
        %v1218 = vrot.slane %v1199, 4
        %v1219 = vsel %vm866, %v1211, %v1218
        %v1220 = vpack.c.bf16 %v969, %v969
        %v1221 = vpack.c.bf16 %v971, %v971
        %v1222 = vpack.c.bf16 %v973, %v973
        %v1223 = vpack.c.bf16 %v975, %v975
        %v1224 = vpack.c.bf16 %v1091, %v1091
        %v1225 = vpack.c.bf16 %v1093, %v1093
        %v1226 = vpack.c.bf16 %v1095, %v1095
        %v1227 = vpack.c.bf16 %v1097, %v1097
        %vm1228 = vcmask 64512
        %v1230 = vsel %vm1228, %v1220, 0
        %v1233 = vsel %vm1228, %v1224, 0
        %1235 = vmatpush.bf16.xpose.msra.mxu0 0
        %1236 = vmatpush.bf16.xpose.msra.mxu0 0
        %1237 = vmatpush.bf16.xpose.msra.mxu0 0
        %1238 = vmatpush.bf16.xpose.msra.mxu0 0
        %1239 = vmatpush.bf16.xpose.msra.mxu0 0
        %1240 = vmatpush.bf16.xpose.msra.mxu0 0
        %1241 = vmatpush.bf16.xpose.msra.mxu0 0
        %1242 = vmatpush.bf16.xpose.msra.mxu0 %v1233
        %1243 = vmatmul.bf16.gmra.mxu0 %v1230
        %v1244 = vpop.f32.mrf.mxu0
        %v1245 = vadd.f32 0.0, %v1244
        %v1246 = vpop.f32.mrf.mxu0
        %1247 = vdwg.mxu0
        %v1249 = vsel %vm1228, %v1221, 0
        %v1252 = vsel %vm1228, %v1225, 0
        %1254 = vmatpush.bf16.xpose.msra.mxu0 0
        %1255 = vmatpush.bf16.xpose.msra.mxu0 0
        %1256 = vmatpush.bf16.xpose.msra.mxu0 0
        %1257 = vmatpush.bf16.xpose.msra.mxu0 0
        %1258 = vmatpush.bf16.xpose.msra.mxu0 0
        %1259 = vmatpush.bf16.xpose.msra.mxu0 0
        %1260 = vmatpush.bf16.xpose.msra.mxu0 0
        %1261 = vmatpush.bf16.xpose.msra.mxu0 %v1252
        %1262 = vmatmul.bf16.gmra.mxu0 %v1249
        %v1263 = vpop.f32.mrf.mxu0
        %v1264 = vadd.f32 0.0, %v1263
        %v1265 = vpop.f32.mrf.mxu0
        %1266 = vdwg.mxu0
        %v1268 = vsel %vm1228, %v1222, 0
        %v1271 = vsel %vm1228, %v1226, 0
        %1273 = vmatpush.bf16.xpose.msra.mxu0 0
        %1274 = vmatpush.bf16.xpose.msra.mxu0 0
        %1275 = vmatpush.bf16.xpose.msra.mxu0 0
        %1276 = vmatpush.bf16.xpose.msra.mxu0 0
        %1277 = vmatpush.bf16.xpose.msra.mxu0 0
        %1278 = vmatpush.bf16.xpose.msra.mxu0 0
        %1279 = vmatpush.bf16.xpose.msra.mxu0 0
        %1280 = vmatpush.bf16.xpose.msra.mxu0 %v1271
        %1281 = vmatmul.bf16.gmra.mxu0 %v1268
        %v1282 = vpop.f32.mrf.mxu0
        %v1283 = vadd.f32 0.0, %v1282
        %v1284 = vpop.f32.mrf.mxu0
        %1285 = vdwg.mxu0
        %v1287 = vsel %vm1228, %v1223, 0
        %v1290 = vsel %vm1228, %v1227, 0
        %1292 = vmatpush.bf16.xpose.msra.mxu0 0
        %1293 = vmatpush.bf16.xpose.msra.mxu0 0
        %1294 = vmatpush.bf16.xpose.msra.mxu0 0
        %1295 = vmatpush.bf16.xpose.msra.mxu0 0
        %1296 = vmatpush.bf16.xpose.msra.mxu0 0
        %1297 = vmatpush.bf16.xpose.msra.mxu0 0
        %1298 = vmatpush.bf16.xpose.msra.mxu0 0
        %1299 = vmatpush.bf16.xpose.msra.mxu0 %v1290
        %1300 = vmatmul.bf16.gmra.mxu0 %v1287
        %v1301 = vpop.f32.mrf.mxu0
        %v1302 = vadd.f32 0.0, %v1301
        %v1303 = vpop.f32.mrf.mxu0
        %1304 = vdwg.mxu0
        %v1305 = vmul.f32 %v1245, 0.35355338
        %v1306 = vmul.f32 %v1264, 0.35355338
        %v1307 = vmul.f32 %v1283, 0.35355338
        %v1308 = vmul.f32 %v1302, 0.35355338
        %v1310 = vperm.slane %v774, 0
        %v1312 = vadd.f32 %v1305, %v1310
        %v1313 = vadd.f32 %v1306, %v1310
        %v1314 = vadd.f32 %v1307, %v1310
        %v1315 = vadd.f32 %v1308, %v1310
        %v1316 = vsel %vm1228, %v1312, -inf
        %1317 = vmax.xlane.f32.xlu0 %v1316
        %v1318 = vpop.xlane.xlu0 %1317
        %v1319 = vsel %vm1228, %v1313, -inf
        %1320 = vmax.xlane.f32.xlu0 %v1319
        %v1321 = vpop.xlane.xlu0 %1320
        %v1322 = vsel %vm1228, %v1314, -inf
        %1323 = vmax.xlane.f32.xlu0 %v1322
        %v1324 = vpop.xlane.xlu0 %1323
        %v1325 = vsel %vm1228, %v1315, -inf
        %1326 = vmax.xlane.f32.xlu0 %v1325
        %v1327 = vpop.xlane.xlu0 %1326
        %v1328 = vsub.f32 %v1312, %v1318
        %v1329 = vsub.f32 %v1313, %v1321
        %v1330 = vsub.f32 %v1314, %v1324
        %v1331 = vsub.f32 %v1315, %v1327
        %v1332 = vmul.f32 %v1328, 1.442695
        %v1333 = vpow.pop %v1332
        %v1334 = vmul.f32 %v1329, 1.442695
        %v1335 = vpow.pop %v1334
        %v1336 = vmul.f32 %v1330, 1.442695
        %v1337 = vpow.pop %v1336
        %v1338 = vmul.f32 %v1331, 1.442695
        %v1339 = vpow.pop %v1338
        %v1340 = vsel %vm1228, %v1333, 0.0
        %1341 = vadd.xlane.f32.xlu0 %v1340
        %v1342 = vpop.xlane.xlu0 %1341
        %v1343 = vsel %vm1228, %v1335, 0.0
        %1344 = vadd.xlane.f32.xlu0 %v1343
        %v1345 = vpop.xlane.xlu0 %1344
        %v1346 = vsel %vm1228, %v1337, 0.0
        %1347 = vadd.xlane.f32.xlu0 %v1346
        %v1348 = vpop.xlane.xlu0 %1347
        %v1349 = vsel %vm1228, %v1339, 0.0
        %1350 = vadd.xlane.f32.xlu0 %v1349
        %v1351 = vpop.xlane.xlu0 %1350
        %v1352 = vrcp.pop %v1342
        %v1353 = vrcp.pop %v1345
        %v1354 = vrcp.pop %v1348
        %v1355 = vrcp.pop %v1351
        %v1356 = vmul.f32 %v1333, %v1352
        %v1357 = vmul.f32 %v1335, %v1353
        %v1358 = vmul.f32 %v1337, %v1354
        %v1359 = vmul.f32 %v1339, %v1355
        %v1360 = vpack.c.bf16 %v1356, %v1356
        %v1361 = vpack.c.bf16 %v1357, %v1357
        %v1362 = vpack.c.bf16 %v1358, %v1358
        %v1363 = vpack.c.bf16 %v1359, %v1359
        %v1364 = vpack.c.bf16 %v1213, %v1213
        %v1365 = vpack.c.bf16 %v1215, %v1215
        %v1366 = vpack.c.bf16 %v1217, %v1217
        %v1367 = vpack.c.bf16 %v1219, %v1219
        %v1369 = vsel %vm1228, %v1360, 0
        %vm1371 = vcmask 1043456
        %v1373 = vsel %vm1371, %v1364, 0
        %1375 = vmatpush.bf16.msra.mxu0 0
        %1376 = vmatpush.bf16.msra.mxu0 0
        %1377 = vmatpush.bf16.msra.mxu0 0
        %1378 = vmatpush.bf16.msra.mxu0 0
        %1379 = vmatpush.bf16.msra.mxu0 0
        %1380 = vmatpush.bf16.msra.mxu0 0
        %1381 = vmatpush.bf16.msra.mxu0 0
        %1382 = vmatpush.bf16.msra.mxu0 %v1373
        %1383 = vmatmul.bf16.gmra.mxu0 %v1369
        %v1384 = vpop.f32.mrf.mxu0
        %v1385 = vadd.f32 0.0, %v1384
        %v1386 = vpop.f32.mrf.mxu0
        %1387 = vdwg.mxu0
        %v1389 = vsel %vm1228, %v1361, 0
        %v1392 = vsel %vm1371, %v1365, 0
        %1394 = vmatpush.bf16.msra.mxu0 0
        %1395 = vmatpush.bf16.msra.mxu0 0
        %1396 = vmatpush.bf16.msra.mxu0 0
        %1397 = vmatpush.bf16.msra.mxu0 0
        %1398 = vmatpush.bf16.msra.mxu0 0
        %1399 = vmatpush.bf16.msra.mxu0 0
        %1400 = vmatpush.bf16.msra.mxu0 0
        %1401 = vmatpush.bf16.msra.mxu0 %v1392
        %1402 = vmatmul.bf16.gmra.mxu0 %v1389
        %v1403 = vpop.f32.mrf.mxu0
        %v1404 = vadd.f32 0.0, %v1403
        %v1405 = vpop.f32.mrf.mxu0
        %1406 = vdwg.mxu0
        %v1408 = vsel %vm1228, %v1362, 0
        %v1411 = vsel %vm1371, %v1366, 0
        %1413 = vmatpush.bf16.msra.mxu0 0
        %1414 = vmatpush.bf16.msra.mxu0 0
        %1415 = vmatpush.bf16.msra.mxu0 0
        %1416 = vmatpush.bf16.msra.mxu0 0
        %1417 = vmatpush.bf16.msra.mxu0 0
        %1418 = vmatpush.bf16.msra.mxu0 0
        %1419 = vmatpush.bf16.msra.mxu0 0
        %1420 = vmatpush.bf16.msra.mxu0 %v1411
        %1421 = vmatmul.bf16.gmra.mxu0 %v1408
        %v1422 = vpop.f32.mrf.mxu0
        %v1423 = vadd.f32 0.0, %v1422
        %v1424 = vpop.f32.mrf.mxu0
        %1425 = vdwg.mxu0
        %v1427 = vsel %vm1228, %v1363, 0
        %v1430 = vsel %vm1371, %v1367, 0
        %1432 = vmatpush.bf16.msra.mxu0 0
        %1433 = vmatpush.bf16.msra.mxu0 0
        %1434 = vmatpush.bf16.msra.mxu0 0
        %1435 = vmatpush.bf16.msra.mxu0 0
        %1436 = vmatpush.bf16.msra.mxu0 0
        %1437 = vmatpush.bf16.msra.mxu0 0
        %1438 = vmatpush.bf16.msra.mxu0 0
        %1439 = vmatpush.bf16.msra.mxu0 %v1430
        %1440 = vmatmul.bf16.gmra.mxu0 %v1427
        %v1441 = vpop.f32.mrf.mxu0
        %v1442 = vadd.f32 0.0, %v1441
        %v1443 = vpop.f32.mrf.mxu0
        %1444 = vdwg.mxu0
        %v1445 = vrot.slane %v1423, 4
        %v1446 = vsel %vm866, %v1445, %v1385
        %v1447 = vrot.slane %v1385, 4
        %v1448 = vsel %vm866, %v1423, %v1447
        %v1450 = vunpack.c.l.s4 1983009808
        %v1451 = vunpack.c.0.s8 %v1450
        %v1452 = vperm.slane %v1446, %v1451
        %v1454 = vunpack.c.l.s4 1983009808
        %v1455 = vunpack.c.0.s8 %v1454
        %v1456 = vperm.slane %v1448, %v1455
        %v1457 = vrot.slane %v1442, 4
        %v1458 = vsel %vm866, %v1457, %v1404
        %v1459 = vrot.slane %v1404, 4
        %v1460 = vsel %vm866, %v1442, %v1459
        %v1462 = vunpack.c.l.s4 1983009808
        %v1463 = vunpack.c.0.s8 %v1462
        %v1464 = vperm.slane %v1458, %v1463
        %v1466 = vunpack.c.l.s4 1983009808
        %v1467 = vunpack.c.0.s8 %v1466
        %v1468 = vperm.slane %v1460, %v1467
        %v1469 = vrot.slane %v1464, 4
        %v1470 = vsel %vm866, %v1469, %v1452
        %v1471 = vrot.slane %v1452, 4
        %v1472 = vsel %vm866, %v1464, %v1471
        %v1474 = vunpack.c.l.s4 1934713408
        %v1475 = vunpack.c.0.s8 %v1474
        %v1476 = vperm.slane %v1470, %v1475
        %v1478 = vunpack.c.l.s4 1934713408
        %v1479 = vunpack.c.0.s8 %v1478
        %v1480 = vperm.slane %v1472, %v1479
        %v1481 = vrot.slane %v1468, 4
        %v1482 = vsel %vm866, %v1481, %v1456
        %v1483 = vrot.slane %v1456, 4
        %v1484 = vsel %vm866, %v1468, %v1483
        %v1486 = vunpack.c.l.s4 1934713408
        %v1487 = vunpack.c.0.s8 %v1486
        %v1488 = vperm.slane %v1482, %v1487
        %v1490 = vunpack.c.l.s4 1934713408
        %v1491 = vunpack.c.0.s8 %v1490
        %v1492 = vperm.slane %v1484, %v1491
        %v1493 = vrot.slane %v1476, 4
        %v1494 = vsel %vm866, 0.0, %v1493
        %v1495 = vrot.slane %v1480, 4
        %v1496 = vsel %vm866, 0.0, %v1495
        %v1497 = vrot.slane %v1488, 4
        %v1498 = vsel %vm866, 0.0, %v1497
        %v1499 = vrot.slane %v1492, 4
        %v1500 = vsel %vm866, 0.0, %v1499
        %v1501 = vsel %vm866, %v1495, %v1476
        %v1503 = vunpack.c.l.s4 1983009808
        %v1504 = vunpack.c.0.s8 %v1503
        %v1505 = vperm.slane %v1501, %v1504
        %v1506 = vrot.slane %v1496, 4
        %v1507 = vsel %vm866, %v1506, %v1494
        %v1509 = vunpack.c.l.s4 1983009808
        %v1510 = vunpack.c.0.s8 %v1509
        %v1511 = vperm.slane %v1507, %v1510
        %v1512 = vsel %vm866, %v1499, %v1488
        %v1514 = vunpack.c.l.s4 1983009808
        %v1515 = vunpack.c.0.s8 %v1514
        %v1516 = vperm.slane %v1512, %v1515
        %v1517 = vrot.slane %v1500, 4
        %v1518 = vsel %vm866, %v1517, %v1498
        %v1520 = vunpack.c.l.s4 1983009808
        %v1521 = vunpack.c.0.s8 %v1520
        %v1522 = vperm.slane %v1518, %v1521
        %v1523 = vrot.slane %v1511, 4
        %v1524 = vsel %vm866, %v1523, %v1505
        %v1525 = vrot.slane %v1505, 4
        %v1526 = vsel %vm866, %v1511, %v1525
        %v1528 = vunpack.c.l.s4 1934713408
        %v1529 = vunpack.c.0.s8 %v1528
        %v1530 = vperm.slane %v1524, %v1529
        %v1532 = vunpack.c.l.s4 1934713408
        %v1533 = vunpack.c.0.s8 %v1532
        %v1534 = vperm.slane %v1526, %v1533
        %v1535 = vrot.slane %v1522, 4
        %v1536 = vsel %vm866, %v1535, %v1516
        %v1537 = vrot.slane %v1516, 4
        %v1538 = vsel %vm866, %v1522, %v1537
        %v1540 = vunpack.c.l.s4 1934713408
        %v1541 = vunpack.c.0.s8 %v1540
        %v1542 = vperm.slane %v1536, %v1541
        %v1544 = vunpack.c.l.s4 1934713408
        %v1545 = vunpack.c.0.s8 %v1544
        %v1546 = vperm.slane %v1538, %v1545
        %v1547 = vrot.slane %v1542, 4
        %v1548 = vsel %vm866, %v1547, %v1530
        %v1549 = vrot.slane %v1530, 4
        %v1550 = vsel %vm866, %v1542, %v1549
        %v1551 = vrot.slane %v1546, 4
        %v1552 = vsel %vm866, %v1551, %v1534
        %v1553 = vrot.slane %v1534, 4
        %v1554 = vsel %vm866, %v1546, %v1553
        %1556 = vrot.lane.b32.xlu0 %v1550, 8
        %v1557 = vpop.permute.xlu0 %1556
        %1560 = vrot.lane.b32.xlu0 %v1552, 16
        %v1561 = vpop.permute.xlu0 %1560
        %1564 = vrot.lane.b32.xlu0 %v1554, 24
        %v1565 = vpop.permute.xlu0 %1564
        %v1567 = vsel %vm1228, %v1548, %v1557
        %vm1568 = vcmask 130048
        %v1569 = vsel %vm1568, %v1567, %v1561
        %vm1570 = vcmask 195584
        %v1571 = vsel %vm1570, %v1569, %v1565
        %v1572 = vpack.c.bf16 %v1571, %v1571
        %v1573 = vld [vmem:[%s730] sm:$0xf]
        %v1574 = vld [vmem:[%s730 + $0x4] sm:$0xf]
        %v1575 = vld [vmem:[%s730 + $0x8] sm:$0xf]
        %v1576 = vld [vmem:[%s730 + $0xc] sm:$0xf]
        %v1577 = vld [vmem:[%s733] sm:$0x1]
        %v1579 = vperm.slane %v1577, 0
        %v1585 = vunpack.c.l.b16 %v1573
        %v1586 = vunpack.c.l.b16 %v1574
        %v1587 = vunpack.c.l.b16 %v1575
        %v1588 = vunpack.c.l.b16 %v1576
        %v1589 = vpack.c.b16 %v1586, %v1585
        %v1590 = vpack.c.b16 %v1588, %v1587
        %v1594 = vsel %vm777, %v1572, 0
        %1596 = vmatpush.bf16.msra.mxu0 0
        %1597 = vmatpush.bf16.msra.mxu0 0
        %1598 = vmatpush.bf16.msra.mxu0 0
        %1599 = vmatpush.bf16.msra.mxu0 0
        %1600 = vmatpush.bf16.msra.mxu0 0
        %1601 = vmatpush.bf16.msra.mxu0 0
        %1602 = vmatpush.bf16.msra.mxu0 %v1590
        %1603 = vmatpush.bf16.msra.mxu0 %v1589
        %1604 = vmatmul.bf16.gmra.mxu0 %v1594
        %v1605 = vpop.f32.mrf.mxu0
        %v1606 = vadd.f32 %v1579, %v1605
        %v1607 = vpop.f32.mrf.mxu0
        %1608 = vdwg.mxu0
        %v1609 = vadd.f32 %v773, %v1606
        %v1610 = vld [vmem:[%s742] sm:$0x1]
        %v1611 = vld [vmem:[%s745] sm:$0x1]
        %v1612 = vsel %vm777, %v1609, 0.0
        %1613 = vadd.xlane.f32.xlu0 %v1612
        %v1614 = vpop.xlane.xlu0 %1613
        %v1615 = vmul.f32 %v1614, %v787
        %v1616 = vsub.f32 %v1609, %v1615
        %v1617 = vmul.f32 %v1616, %v1616
        %v1618 = vsel %vm777, %v1617, 0.0
        %1619 = vadd.xlane.f32.xlu0 %v1618
        %v1620 = vpop.xlane.xlu0 %1619
        %v1621 = vmul.f32 %v1620, 0.032258064
        %v1622 = vrsqrt.pop %v1621
        %v1623 = vmul.f32 %v1622, %v1621
        %v1624 = vmul.f32 %v1623, %v1622
        %v1625 = vmul.f32 0.5, %v1624
        %v1626 = vsub.f32 1.5, %v1625
        %v1627 = vmul.f32 %v1622, %v1626
        %v1628 = vmul.f32 %v1621, %v1627
        %vm1629 = vcmp.eq.f32.partialorder %v1621, inf
        %v1630 = vsel %vm1629, %v1621, %v1628
        %vm1631 = vcmp.eq.f32.partialorder %v1621, 0.0
        %v1632 = vand.u32 %v1621, 2147483648
        %v1633 = vsel %vm1631, %v1632, %v1630
        %v1634 = vadd.f32 %v1633, 1e-06
        %v1635 = vrcp.pop %v1634
        %v1637 = vperm.slane %v1610, 0
        %v1639 = vmul.f32 %v1637, %v1616
        %v1640 = vmul.f32 %v1639, %v1635
        %v1642 = vperm.slane %v1611, 0
        %v1644 = vadd.f32 %v1640, %v1642
        %v1645 = vpack.c.bf16 %v1644, %v1644
        %v1646 = vld [vmem:[%s750] sm:$0xf]
        %v1647 = vld [vmem:[%s750 + $0x4] sm:$0xf]
        %v1648 = vld [vmem:[%s750 + $0x8] sm:$0xf]
        %v1649 = vld [vmem:[%s750 + $0xc] sm:$0xf]
        %v1650 = vld [vmem:[%s753] sm:$0x1]
        %v1652 = vperm.slane %v1650, 0
        %v1658 = vunpack.c.l.b16 %v1646
        %v1659 = vunpack.c.l.b16 %v1647
        %v1660 = vunpack.c.l.b16 %v1648
        %v1661 = vunpack.c.l.b16 %v1649
        %v1662 = vpack.c.b16 %v1659, %v1658
        %v1663 = vpack.c.b16 %v1661, %v1660
        %v1667 = vsel %vm777, %v1645, 0
        %1669 = vmatpush.bf16.msra.mxu0 0
        %1670 = vmatpush.bf16.msra.mxu0 0
        %1671 = vmatpush.bf16.msra.mxu0 0
        %1672 = vmatpush.bf16.msra.mxu0 0
        %1673 = vmatpush.bf16.msra.mxu0 0
        %1674 = vmatpush.bf16.msra.mxu0 0
        %1675 = vmatpush.bf16.msra.mxu0 %v1663
        %1676 = vmatpush.bf16.msra.mxu0 %v1662
        %1677 = vmatmul.bf16.gmra.mxu0 %v1667
        %v1678 = vpop.f32.mrf.mxu0
        %v1679 = vadd.f32 %v1652, %v1678
        %v1680 = vpop.f32.mrf.mxu0
        %1681 = vdwg.mxu0
        %v1682 = vmax.f32 %v1679, 0.0
        %v1683 = vpack.c.bf16 %v1682, %v1682
        %v1684 = vld [vmem:[%s758] sm:$0xf]
        %v1685 = vld [vmem:[%s758 + $0x4] sm:$0xf]
        %v1686 = vld [vmem:[%s758 + $0x8] sm:$0xf]
        %v1687 = vld [vmem:[%s758 + $0xc] sm:$0xf]
        %v1688 = vld [vmem:[%s758 + $0x10] sm:$0xf]
        %v1689 = vld [vmem:[%s758 + $0x14] sm:$0xf]
        %v1690 = vld [vmem:[%s758 + $0x18] sm:$0xf]
        %v1691 = vld [vmem:[%s758 + $0x1c] sm:$0xf]
        %v1692 = vld [vmem:[%s761] sm:$0x1]
        %v1694 = vperm.slane %v1692, 0
        %v1704 = vunpack.c.l.b16 %v1684
        %v1705 = vunpack.c.l.b16 %v1685
        %v1706 = vunpack.c.l.b16 %v1686
        %v1707 = vunpack.c.l.b16 %v1687
        %v1708 = vunpack.c.l.b16 %v1688
        %v1709 = vunpack.c.l.b16 %v1689
        %v1710 = vunpack.c.l.b16 %v1690
        %v1711 = vunpack.c.l.b16 %v1691
        %v1712 = vpack.c.b16 %v1705, %v1704
        %v1713 = vpack.c.b16 %v1707, %v1706
        %v1714 = vpack.c.b16 %v1709, %v1708
        %v1715 = vpack.c.b16 %v1711, %v1710
        %vm1720 = vcmask 523264
        %v1722 = vsel %vm1720, %v1683, 0
        %1724 = vmatpush.bf16.msra.mxu0 0
        %1725 = vmatpush.bf16.msra.mxu0 0
        %1726 = vmatpush.bf16.msra.mxu0 0
        %1727 = vmatpush.bf16.msra.mxu0 0
        %1728 = vmatpush.bf16.msra.mxu0 %v1715
        %1729 = vmatpush.bf16.msra.mxu0 %v1714
        %1730 = vmatpush.bf16.msra.mxu0 %v1713
        %1731 = vmatpush.bf16.msra.mxu0 %v1712
        %1732 = vmatmul.bf16.gmra.mxu0 %v1722
        %v1733 = vpop.f32.mrf.mxu0
        %v1734 = vadd.f32 %v1694, %v1733
        %v1735 = vpop.f32.mrf.mxu0
        %1736 = vdwg.mxu0
        %v1737 = vadd.f32 %v1609, %v1734
        %1738 = vst.msk [vmem:[#allocation2] sm:$0xff] %vm777, %v1737
        %p1739 = scmp.eq.s32.totalorder %s36, 1
        // Predicated region
        $region93: #{encoder_forward.1} parent=87 // pred_check
          %p1740 = pneg %p1739
        $region94: #{encoder_forward.1} parent=87 // pred_check_branch
          %1742 = sbr.rel (%p1740) target = $region96
        $region95: #{encoder_forward.1} parent=87 // pred_region
          %v1743 = vld [vmem:[%s15] sm:$0x1]
          %v1744 = vld [vmem:[%s16] sm:$0x1]
          %v1745 = vsel %vm777, %v1737, 0.0
          %1746 = vadd.xlane.f32.xlu0 %v1745
          %v1747 = vpop.xlane.xlu0 %1746
          %v1748 = vmul.f32 %v1747, %v787
          %v1749 = vsub.f32 %v1737, %v1748
          %v1750 = vmul.f32 %v1749, %v1749
          %v1751 = vsel %vm777, %v1750, 0.0
          %1752 = vadd.xlane.f32.xlu0 %v1751
          %v1753 = vpop.xlane.xlu0 %1752
          %v1754 = vmul.f32 %v1753, 0.032258064
          %v1755 = vrsqrt.pop %v1754
          %v1756 = vmul.f32 %v1755, %v1754
          %v1757 = vmul.f32 %v1756, %v1755
          %v1758 = vmul.f32 0.5, %v1757
          %v1759 = vsub.f32 1.5, %v1758
          %v1760 = vmul.f32 %v1755, %v1759
          %v1761 = vmul.f32 %v1754, %v1760
          %vm1762 = vcmp.eq.f32.partialorder %v1754, inf
          %v1763 = vsel %vm1762, %v1754, %v1761
          %vm1764 = vcmp.eq.f32.partialorder %v1754, 0.0
          %v1765 = vand.u32 %v1754, 2147483648
          %v1766 = vsel %vm1764, %v1765, %v1763
          %v1767 = vadd.f32 %v1766, 1e-06
          %v1768 = vrcp.pop %v1767
          %v1770 = vperm.slane %v1743, 0
          %v1772 = vmul.f32 %v1770, %v1749
          %v1773 = vmul.f32 %v1772, %v1768
          %v1775 = vperm.slane %v1744, 0
          %v1777 = vadd.f32 %v1773, %v1775
          %1778 = vst.msk [vmem:[%s710] sm:$0xff] %vm777, %v1777
        $region96: #{encoder_forward.1} parent=87 // pred_fallthru
          _
        %s1779 = sand.u32 %s478, 1
        %s1780 = scalar_lea.sflag [#allocation4], %s1779
        %s1781 = sand.u32 %s478, 1
        %s1782 = smul.addr %s1781, 8
        %s1783 = scalar_lea.vmem [#allocation3], %s1782
        // Predicated region
        $region97: #{encoder_forward.1} parent=87 // pred_check
          %p1784 = pneg %p488
        $region98: #{encoder_forward.1} parent=87 // pred_check_branch
          %1786 = sbr.rel (%p1784) target = $region100
        $region99: #{encoder_forward.1} parent=87 // pred_region
          %1788 = vsyncadd %s1780, 0
          %s1789 = smul.addr %s35, 8
          %s1790 = scalar_lea.hbm %s17, %s1789
          %s1792 = sshll.u32 %s1783, 4
          %s1793 = int_to_ptr.vmem [resolvable:$true] %s1792
          %s1794 = sshll.u32 %s1790, 4
          %s1795 = int_to_ptr.hbm [resolvable:$true] %s1794
          %1797 = dma.vmem_to_hbm [thread:$0]  %s1793, 128, %s1795, %s1780
        $region100: #{encoder_forward.1} parent=87 // pred_fallthru
          _
      $region88: #{encoder_forward.1} parent=5 // pred_fallthru
        _
      %p1798 = scmp.le.s32.totalorder 2, %s26
      // Predicated region
      $region101: #{encoder_forward.1} parent=5 // pred_check
        %p1799 = pneg %p1798
      $region102: #{encoder_forward.1} parent=5 // pred_check_branch
        %1801 = sbr.rel (%p1799) target = $region104
      $region103: #{encoder_forward.1} parent=5 // pred_region
        %s1802 = ssub.s32 %s26, 2
        // Predicated region
        $region105: #{encoder_forward.1} parent=103 // pred_check
          %p1803 = pneg %p494
        $region106: #{encoder_forward.1} parent=103 // pred_check_branch
          %1805 = sbr.rel (%p1803) target = $region108
        $region107: #{encoder_forward.1} parent=103 // pred_region
          %s1806 = sand.u32 %s479, 1
          %s1807 = scalar_lea.sflag [#allocation4], %s1806
          %s1808 = sand.u32 %s479, 1
          %s1809 = smul.addr %s1808, 8
          %s1810 = scalar_lea.vmem [#allocation3], %s1809
          %1812 = dma.done %s1807, 128
        $region108: #{encoder_forward.1} parent=103 // pred_fallthru
          _
      $region104: #{encoder_forward.1} parent=5 // pred_fallthru
        _
    $region6: #{encoder_forward.1} parent=1 // loop_footer
      %s30 = sadd.s32 1, %s26
    $region7: #{encoder_forward.1} parent=1 // loop_footer_branch
      %25 = sbr.rel target = $region3
    $region8: #{encoder_forward.1} parent=1 // loop_exit
      _
    %1813 = vsyncpa [#allocation4], 1
    %s1814 = scalar_lea.sflag [#allocation4], 1
    %1815 = vsyncpa %s1814, 1

</llo_original>
